<compile_context>
chip_gen: v5e
topology: v5e:2x2
jax: 0.10.0
libtpu: 0.0.40
codegen_flags: <defaults>
</compile_context>

<pallas_src>
import jax
import jax.numpy as jnp
from jax.experimental import pallas as pl
from jax.experimental.pallas import tpu as pltpu


def _round_up(x, m):
    return (x + m - 1) // m * m


def _conv_relu_pool_kernel(p_ref, w_ref, b_ref, o_ref):
    """Fused conv(as matmul) + bias + ReLU + 2x2 max-pool for one batch block.

    p_ref: (4*G, K) bf16  im2col rows, ordered (pool_group, image, position)
    w_ref: (K, CO)  bf16  resident weight (constant across the grid)
    b_ref: (1, CO)  f32   resident bias
    o_ref: (G, CO)        pooled + ReLU'd rows, ordered (image, position)
    """
    g = o_ref.shape[0]
    # Single MXU matmul over all 4*G rows with f32 accumulation.
    m = jnp.dot(p_ref[...], w_ref[...], preferred_element_type=jnp.float32)
    # 2x2 max-pool = max over the four G-row groups (aligned static slices).
    # Max commutes with the shared bias add and ReLU is monotone, so pool first.
    m = jnp.maximum(jnp.maximum(m[0 * g:1 * g], m[1 * g:2 * g]),
                    jnp.maximum(m[2 * g:3 * g], m[3 * g:4 * g]))
    # f32 bias + ReLU epilogue; cast only at the store.
    o_ref[...] = jnp.maximum(m + b_ref[...], 0.0).astype(o_ref.dtype)


def _pick_batch_block(batch, target=8):
    """Largest divisor of `batch` <= target, preferring >= 2 grid blocks (v7x TCs)."""
    bb = max(1, min(target, batch))
    while batch % bb:
        bb -= 1
    if batch // bb < 2 and bb > 1:
        bb = bb // 2
        while batch % bb:
            bb -= 1
    return max(bb, 1)


def _im2col_pool_groups_nhwc(x_nhwc, kh, kw, np_pad, bb):
    """NHWC image block -> bf16 im2col rows grouped by the 2x2 pool window.

    Returns (nblk * 4 * bb * np_pad, K) with row order (batch_block, pool_group,
    image, pooled_position) and feature order ci*(kh*kw) + ky*kw + kx, matching
    torch's weight.reshape(CO, -1).
    """
    B, H, W, C = x_nhwc.shape
    HO, WO = H - kh + 1, W - kw + 1
    HP, WP = HO // 2, WO // 2
    cols = [x_nhwc[:, ky:ky + HO, kx:kx + WO, :]
            for ky in range(kh) for kx in range(kw)]
    p = jnp.stack(cols, axis=-1)                    # (B, HO, WO, C, kh*kw)
    K = C * kh * kw
    p = p.reshape(B, HO, WO, K)                     # feature = c*kh*kw + ky*kw + kx
    p = p.reshape(B, HP, 2, WP, 2, K)               # split 2x2 pool windows
    p = p.transpose(2, 4, 0, 1, 3, 5)               # (2, 2, B, HP, WP, K)
    p = p.reshape(4, B, HP * WP, K)
    npool = HP * WP
    if np_pad > npool:
        p = jnp.pad(p, ((0, 0), (0, 0), (0, np_pad - npool), (0, 0)))
    nblk = B // bb
    p = p.reshape(4, nblk, bb, np_pad, K).transpose(1, 0, 2, 3, 4)
    p = p.reshape(nblk * 4 * bb * np_pad, K)
    return p.astype(jnp.bfloat16), HP, WP


def conv_relu_pool(x_nhwc, weight, bias, *, out_dtype, batch_block=8):
    """Conv2d(5x5, valid) -> ReLU -> MaxPool2d(2,2). NHWC in / NHWC out."""
    B, H, W, _ = x_nhwc.shape
    CO, CI, KH, KW = weight.shape
    K = CI * KH * KW

    bb = _pick_batch_block(B, batch_block)
    nblk = B // bb

    HO, WO = H - KH + 1, W - KW + 1
    HP, WP = HO // 2, WO // 2
    npool = HP * WP
    np_pad = _round_up(npool, 32)            # sublane-aligned for f32/bf16 tiles

    patches, HP, WP = _im2col_pool_groups_nhwc(x_nhwc, KH, KW, np_pad, bb)

    # Lane-layout: K on sublanes, CO (unpadded) on lanes; bf16 matmul inputs,
    # f32 bias so the in-kernel epilogue stays f32.
    w_mat = weight.reshape(CO, K).T.astype(jnp.bfloat16)
    b_mat = bias.reshape(1, CO).astype(jnp.float32)

    g_rows = bb * np_pad                     # output rows per grid block
    out_itemsize = jnp.dtype(out_dtype).itemsize
    flops = 2 * (4 * B * np_pad) * K * CO
    bytes_accessed = int(patches.size * 2 + w_mat.size * 2 + b_mat.size * 4
                         + B * np_pad * CO * out_itemsize)

    out = pl.pallas_call(
        _conv_relu_pool_kernel,
        out_shape=jax.ShapeDtypeStruct((nblk * g_rows, CO), out_dtype),
        grid=(nblk,),
        in_specs=[
            pl.BlockSpec((4 * g_rows, K), lambda i: (i, 0)),   # batch-blocked patches
            pl.BlockSpec((K, CO), lambda i: (0, 0)),           # resident weight
            pl.BlockSpec((1, CO), lambda i: (0, 0)),           # resident bias
        ],
        out_specs=pl.BlockSpec((g_rows, CO), lambda i: (i, 0)),
        compiler_params=pltpu.CompilerParams(
            dimension_semantics=("parallel",),
            vmem_limit_bytes=32 * 1024 * 1024),
        cost_estimate=pl.CostEstimate(
            flops=int(flops), transcendentals=0, bytes_accessed=bytes_accessed),
    )(patches, w_mat, b_mat)

    # (B*np_pad, CO) rows ordered (image, position) -> NHWC, dropping row padding.
    out = out.reshape(B, np_pad, CO)[:, :npool, :].reshape(B, HP, WP, CO)
    return out


@jax.jit
def conv_block_forward(x, w1, b1, w2, b2):
    """Matches ConvBlock.forward: pool(relu(conv1)) -> pool(relu(conv2)) -> flatten."""
    x_nhwc = x.transpose(0, 2, 3, 1)                              # NCHW -> NHWC once
    h = conv_relu_pool(x_nhwc, w1, b1, out_dtype=jnp.bfloat16)    # (B, 14, 14, 6)
    h = conv_relu_pool(h, w2, b2, out_dtype=x.dtype)              # (B, 5, 5, 16)
    # Match torch's x.view(-1, 16*5*5) flattening order (NCHW).
    return h.transpose(0, 3, 1, 2).reshape(x.shape[0], 16 * 5 * 5)


def init_params(key, dtype=jnp.float32):
    """Deterministic init mirroring nn.Conv2d default U(-1/sqrt(fan_in), ...)."""
    k1w, k1b, k2w, k2b = jax.random.split(key, 4)

    def conv_init(kw, kb, co, ci, kh, kwid):
        bound = 1.0 / jnp.sqrt(jnp.array(ci * kh * kwid, jnp.float32))
        w = jax.random.uniform(kw, (co, ci, kh, kwid), dtype, -bound, bound)
        b = jax.random.uniform(kb, (co,), dtype, -bound, bound)
        return w, b

    w1, b1 = conv_init(k1w, k1b, 6, 3, 5, 5)
    w2, b2 = conv_init(k2w, k2b, 16, 6, 5, 5)
    return w1, b1, w2, b2


def _reference(x, w1, b1, w2, b2):
    """Pure-JAX f32 reference (XLA conv / reduce_window)."""
    def conv(x, w, b):
        y = jax.lax.conv_general_dilated(
            x, w, window_strides=(1, 1), padding="VALID",
            dimension_numbers=("NCHW", "OIHW", "NCHW"))
        return y + b.reshape(1, -1, 1, 1)

    def pool(x):
        return jax.lax.reduce_window(
            x, -jnp.inf, jax.lax.max, (1, 1, 2, 2), (1, 1, 2, 2), "VALID")

    h = pool(jax.nn.relu(conv(x, w1, b1)))
    h = pool(jax.nn.relu(conv(h, w2, b2)))
    return h.reshape(x.shape[0], -1)


if __name__ == "__main__":
    key = jax.random.PRNGKey(0)
    k_x, k_p = jax.random.split(key)

    # ConvBlock's flatten to 16*5*5 implies 32x32 spatial input (LeNet/CIFAR).
    batch = 4
    x = jax.random.normal(k_x, (batch, 3, 32, 32), jnp.float32)
    w1, b1, w2, b2 = init_params(k_p)

    y = conv_block_forward(x, w1, b1, w2, b2)
    jax.block_until_ready(y)

    assert y.shape == (batch, 400), f"bad output shape {y.shape}"
    y_ref = _reference(x, w1, b1, w2, b2)
    max_err = float(jnp.max(jnp.abs(y - y_ref)))
    assert jnp.allclose(y, y_ref, atol=3e-2, rtol=3e-2), (
        f"mismatch vs reference (max abs err {max_err})")

    print("KERNEL_OK")
</pallas_src>

<mosaic_0001>
module attributes {stable_mosaic.version = 11 : i64} {
  func.func @_conv_relu_pool_kernel(%arg0: i32, %arg1: memref<1792x75xbf16, #tpu.memory_space<vmem>>, %arg2: memref<75x6xbf16, #tpu.memory_space<vmem>>, %arg3: memref<1x6xf32, #tpu.memory_space<vmem>>, %arg4: memref<448x6xbf16, #tpu.memory_space<vmem>>) attributes {dimension_semantics = [#tpu.dimension_semantics<parallel>], iteration_bounds = array<i64: 2>, scalar_prefetch = 0 : i64, scratch_operands = 0 : i64, tpu.core_type = #tpu.core_type<tc>, window_params = [{transform_indices = @transform_0, window_bounds = array<i64: 1792, 75>}, {pipeline_mode = #tpu.pipeline_mode<synchronous>, transform_indices = @transform_1, window_bounds = array<i64: 75, 6>}, {pipeline_mode = #tpu.pipeline_mode<synchronous>, transform_indices = @transform_2, window_bounds = array<i64: 1, 6>}, {transform_indices = @transform_3, window_bounds = array<i64: 448, 6>}]} {
    %c0 = arith.constant 0 : index
    %c0_0 = arith.constant 0 : index
    %0 = vector.load %arg1[%c0, %c0_0] : memref<1792x75xbf16, #tpu.memory_space<vmem>>, vector<1792x75xbf16>
    %c0_1 = arith.constant 0 : index
    %c0_2 = arith.constant 0 : index
    %1 = vector.load %arg2[%c0_1, %c0_2] : memref<75x6xbf16, #tpu.memory_space<vmem>>, vector<75x6xbf16>
    %cst = arith.constant dense<0.000000e+00> : vector<1792x6xf32>
    %2 = tpu.matmul %0, %1, %cst {dimension_numbers = #tpu.dot_dimension_numbers<[1], [0], [0], [1], [0, 0, 1, 1], [], []>} : vector<1792x75xbf16>, vector<75x6xbf16>, vector<1792x6xf32> -> vector<1792x6xf32>
    %3 = vector.extract_strided_slice %2 {offsets = [0, 0], sizes = [448, 6], strides = [1, 1]} : vector<1792x6xf32> to vector<448x6xf32>
    %4 = vector.extract_strided_slice %2 {offsets = [448, 0], sizes = [448, 6], strides = [1, 1]} : vector<1792x6xf32> to vector<448x6xf32>
    %5 = arith.maximumf %3, %4 : vector<448x6xf32>
    %6 = vector.extract_strided_slice %2 {offsets = [896, 0], sizes = [448, 6], strides = [1, 1]} : vector<1792x6xf32> to vector<448x6xf32>
    %7 = vector.extract_strided_slice %2 {offsets = [1344, 0], sizes = [448, 6], strides = [1, 1]} : vector<1792x6xf32> to vector<448x6xf32>
    %8 = arith.maximumf %6, %7 : vector<448x6xf32>
    %9 = arith.maximumf %5, %8 : vector<448x6xf32>
    %c0_3 = arith.constant 0 : index
    %c0_4 = arith.constant 0 : index
    %10 = vector.load %arg3[%c0_3, %c0_4] : memref<1x6xf32, #tpu.memory_space<vmem>>, vector<1x6xf32>
    %11 = vector.broadcast %10 : vector<1x6xf32> to vector<448x6xf32>
    %12 = arith.addf %9, %11 : vector<448x6xf32>
    %cst_5 = arith.constant 0.000000e+00 : f32
    %13 = vector.broadcast %cst_5 : f32 to vector<448x6xf32>
    %14 = arith.maximumf %12, %13 : vector<448x6xf32>
    %15 = arith.truncf %14 : vector<448x6xf32> to vector<448x6xbf16>
    %c0_6 = arith.constant 0 : index
    %c0_7 = arith.constant 0 : index
    %16 = vector.load %arg4[%c0_6, %c0_7] : memref<448x6xbf16, #tpu.memory_space<vmem>>, vector<448x6xbf16>
    tpu.vector_store %arg4[%c0_6, %c0_7], %15 {strides = array<i32>} : memref<448x6xbf16, #tpu.memory_space<vmem>>, vector<448x6xbf16>,
    return
  }
  func.func @transform_0(%arg0: i32) -> (i32, i32) {
    %c0_i32 = arith.constant 0 : i32
    %c0_i32_0 = arith.constant 0 : i32
    return %arg0, %c0_i32 : i32, i32
  }
  func.func @transform_1(%arg0: i32) -> (i32, i32) {
    %c0_i32 = arith.constant 0 : i32
    %c0_i32_0 = arith.constant 0 : i32
    %c0_i32_1 = arith.constant 0 : i32
    return %c0_i32, %c0_i32_0 : i32, i32
  }
  func.func @transform_2(%arg0: i32) -> (i32, i32) {
    %c0_i32 = arith.constant 0 : i32
    %c0_i32_0 = arith.constant 0 : i32
    %c0_i32_1 = arith.constant 0 : i32
    return %c0_i32, %c0_i32_0 : i32, i32
  }
  func.func @transform_3(%arg0: i32) -> (i32, i32) {
    %c0_i32 = arith.constant 0 : i32
    %c0_i32_0 = arith.constant 0 : i32
    return %arg0, %c0_i32 : i32, i32
  }
}

module attributes {stable_mosaic.version = 11 : i64} {
  func.func @_conv_relu_pool_kernel(%arg0: i32, %arg1: memref<256x150xbf16, #tpu.memory_space<vmem>>, %arg2: memref<150x16xbf16, #tpu.memory_space<vmem>>, %arg3: memref<1x16xf32, #tpu.memory_space<vmem>>, %arg4: memref<64x16xf32, #tpu.memory_space<vmem>>) attributes {dimension_semantics = [#tpu.dimension_semantics<parallel>], iteration_bounds = array<i64: 2>, scalar_prefetch = 0 : i64, scratch_operands = 0 : i64, tpu.core_type = #tpu.core_type<tc>, window_params = [{transform_indices = @transform_0, window_bounds = array<i64: 256, 150>}, {pipeline_mode = #tpu.pipeline_mode<synchronous>, transform_indices = @transform_1, window_bounds = array<i64: 150, 16>}, {pipeline_mode = #tpu.pipeline_mode<synchronous>, transform_indices = @transform_2, window_bounds = array<i64: 1, 16>}, {transform_indices = @transform_3, window_bounds = array<i64: 64, 16>}]} {
    %c0 = arith.constant 0 : index
    %c0_0 = arith.constant 0 : index
    %0 = vector.load %arg1[%c0, %c0_0] : memref<256x150xbf16, #tpu.memory_space<vmem>>, vector<256x150xbf16>
    %c0_1 = arith.constant 0 : index
    %c0_2 = arith.constant 0 : index
    %1 = vector.load %arg2[%c0_1, %c0_2] : memref<150x16xbf16, #tpu.memory_space<vmem>>, vector<150x16xbf16>
    %cst = arith.constant dense<0.000000e+00> : vector<256x16xf32>
    %2 = tpu.matmul %0, %1, %cst {dimension_numbers = #tpu.dot_dimension_numbers<[1], [0], [0], [1], [0, 0, 1, 1], [], []>} : vector<256x150xbf16>, vector<150x16xbf16>, vector<256x16xf32> -> vector<256x16xf32>
    %3 = vector.extract_strided_slice %2 {offsets = [0, 0], sizes = [64, 16], strides = [1, 1]} : vector<256x16xf32> to vector<64x16xf32>
    %4 = vector.extract_strided_slice %2 {offsets = [64, 0], sizes = [64, 16], strides = [1, 1]} : vector<256x16xf32> to vector<64x16xf32>
    %5 = arith.maximumf %3, %4 : vector<64x16xf32>
    %6 = vector.extract_strided_slice %2 {offsets = [128, 0], sizes = [64, 16], strides = [1, 1]} : vector<256x16xf32> to vector<64x16xf32>
    %7 = vector.extract_strided_slice %2 {offsets = [192, 0], sizes = [64, 16], strides = [1, 1]} : vector<256x16xf32> to vector<64x16xf32>
    %8 = arith.maximumf %6, %7 : vector<64x16xf32>
    %9 = arith.maximumf %5, %8 : vector<64x16xf32>
    %c0_3 = arith.constant 0 : index
    %c0_4 = arith.constant 0 : index
    %10 = vector.load %arg3[%c0_3, %c0_4] : memref<1x16xf32, #tpu.memory_space<vmem>>, vector<1x16xf32>
    %11 = vector.broadcast %10 : vector<1x16xf32> to vector<64x16xf32>
    %12 = arith.addf %9, %11 : vector<64x16xf32>
    %cst_5 = arith.constant 0.000000e+00 : f32
    %13 = vector.broadcast %cst_5 : f32 to vector<64x16xf32>
    %14 = arith.maximumf %12, %13 : vector<64x16xf32>
    %c0_6 = arith.constant 0 : index
    %c0_7 = arith.constant 0 : index
    %15 = vector.load %arg4[%c0_6, %c0_7] : memref<64x16xf32, #tpu.memory_space<vmem>>, vector<64x16xf32>
    tpu.vector_store %arg4[%c0_6, %c0_7], %14 {strides = array<i32>} : memref<64x16xf32, #tpu.memory_space<vmem>>, vector<64x16xf32>,
    return
  }
  func.func @transform_0(%arg0: i32) -> (i32, i32) {
    %c0_i32 = arith.constant 0 : i32
    %c0_i32_0 = arith.constant 0 : i32
    return %arg0, %c0_i32 : i32, i32
  }
  func.func @transform_1(%arg0: i32) -> (i32, i32) {
    %c0_i32 = arith.constant 0 : i32
    %c0_i32_0 = arith.constant 0 : i32
    %c0_i32_1 = arith.constant 0 : i32
    return %c0_i32, %c0_i32_0 : i32, i32
  }
  func.func @transform_2(%arg0: i32) -> (i32, i32) {
    %c0_i32 = arith.constant 0 : i32
    %c0_i32_0 = arith.constant 0 : i32
    %c0_i32_1 = arith.constant 0 : i32
    return %c0_i32, %c0_i32_0 : i32, i32
  }
  func.func @transform_3(%arg0: i32) -> (i32, i32) {
    %c0_i32 = arith.constant 0 : i32
    %c0_i32_0 = arith.constant 0 : i32
    return %arg0, %c0_i32 : i32, i32
  }
}

</mosaic_0001>

<llo_original>
// kernel: conv_block_forward.2
$region0: #{conv_block_forward.2}
  #allocation0 [shape = 'u32[]', space=smem, size = 0x4, offset = 0x4, fixed_abs, tag = 'smem constant byte address 0x4 - core index']
  #allocation1 [shape = 'u32[72,128]{1,0:T(1,128)}', space=vmem, size = 0x9000, scoped, tag = 'internal scratch']
  %s0 = inlined_call_operand.vmem [shape: bf16[3584,75], index: 0, kind: input, shape index: {}]
  %s1 = inlined_call_operand.vmem [shape: bf16[75,6], index: 1, kind: input, shape index: {}]
  %s2 = inlined_call_operand.vmem [shape: f32[1,6], index: 2, kind: input, shape index: {}]
  %s3 = inlined_call_operand.vmem [shape: bf16[896,6], index: 3, kind: output, shape index: {}]
  %s4 = sld [smem:[#allocation0]]
  $region45: #{conv_block_forward.2} parent=0
    _
  %s6 = ssub.s32 1, %s4
  %s7 = scalar_select 0, %s6, %s4
  loop: start=0, step=1, limit=4
  $region2: #{conv_block_forward.2} parent=0 // loop_pre_header
    _
  $region3: #{conv_block_forward.2} parent=0 // loop_header
    %s9 = sphi 0, %s13
    %p10 = scmp.ge.s32.totalorder %s9, 4
    %s19 = sphi 0, %s21
    %s22 = sphi 0, %s19
    %s23 = sphi 0, %s22
    %s39 = sphi 0, %s23
    %s43 = sphi 0, %s43
    %s45 = sphi 0, %s43
    %s46 = sphi 0, %s45
    %s60 = sphi 0, %s46
    %s64 = sphi 0, %s64
    %s66 = sphi 0, %s64
    %s67 = sphi 0, %s66
    %s81 = sphi 0, %s67
    %s87 = sphi 0, %s89
    %s90 = sphi 0, %s87
    %s91 = sphi 0, %s90
    %s107 = sphi 0, %s91
  $region4: #{conv_block_forward.2} parent=0 // loop_header_branch
    %12 = sbr.rel (%p10) target = $region8
  $region5: #{conv_block_forward.2} parent=0 // loop_body
    %s14 = ssub.s32 %s9, 1
    %s15 = ssub.s32 %s9, 2
    %s16 = sadd.s32 %s9, 1
    %s17 = ssub.s32 %s9, %s16
    %p18 = scmp.eq.s32.totalorder %s17, 0
    %s20 = sadd.s32 %s19, 1
    %s21 = scalar_select %p18, %s19, %s20
    %p24 = pneg %p18
    %p25 = scmp.eq.s32.totalorder %s9, 1
    %p26 = por %p24, %p25
    %p27 = scmp.ne.s32.totalorder %s19, %s22
    %p28 = scmp.eq.s32.totalorder %s9, 0
    %p29 = por %p27, %p28
    %p30 = scmp.ne.s32.totalorder %s19, %s22
    %p31 = scmp.eq.s32.totalorder %s14, 1
    %p32 = por %p30, %p31
    %p33 = scmp.ne.s32.totalorder %s22, %s23
    %p34 = scmp.eq.s32.totalorder %s14, 0
    %p35 = por %p33, %p34
    %p36 = scmp.ne.s32.totalorder %s22, %s23
    %p37 = scmp.eq.s32.totalorder %s15, 1
    %p38 = por %p36, %p37
    %p40 = scmp.ne.s32.totalorder %s23, %s39
    %p41 = scmp.eq.s32.totalorder %s15, 0
    %p42 = por %p40, %p41
    %s44 = sadd.s32 %s43, 1
    %p47 = scmp.eq.s32.totalorder %s9, 1
    %p48 = scmp.ne.s32.totalorder %s43, %s45
    %p49 = scmp.eq.s32.totalorder %s9, 0
    %p50 = por %p48, %p49
    %p51 = scmp.ne.s32.totalorder %s43, %s45
    %p52 = scmp.eq.s32.totalorder %s14, 1
    %p53 = por %p51, %p52
    %p54 = scmp.ne.s32.totalorder %s45, %s46
    %p55 = scmp.eq.s32.totalorder %s14, 0
    %p56 = por %p54, %p55
    %p57 = scmp.ne.s32.totalorder %s45, %s46
    %p58 = scmp.eq.s32.totalorder %s15, 1
    %p59 = por %p57, %p58
    %p61 = scmp.ne.s32.totalorder %s46, %s60
    %p62 = scmp.eq.s32.totalorder %s15, 0
    %p63 = por %p61, %p62
    %s65 = sadd.s32 %s64, 1
    %p68 = scmp.eq.s32.totalorder %s9, 1
    %p69 = scmp.ne.s32.totalorder %s64, %s66
    %p70 = scmp.eq.s32.totalorder %s9, 0
    %p71 = por %p69, %p70
    %p72 = scmp.ne.s32.totalorder %s64, %s66
    %p73 = scmp.eq.s32.totalorder %s14, 1
    %p74 = por %p72, %p73
    %p75 = scmp.ne.s32.totalorder %s66, %s67
    %p76 = scmp.eq.s32.totalorder %s14, 0
    %p77 = por %p75, %p76
    %p78 = scmp.ne.s32.totalorder %s66, %s67
    %p79 = scmp.eq.s32.totalorder %s15, 1
    %p80 = por %p78, %p79
    %p82 = scmp.ne.s32.totalorder %s67, %s81
    %p83 = scmp.eq.s32.totalorder %s15, 0
    %p84 = por %p82, %p83
    %s85 = ssub.s32 %s9, %s16
    %p86 = scmp.eq.s32.totalorder %s85, 0
    %s88 = sadd.s32 %s87, 1
    %s89 = scalar_select %p86, %s87, %s88
    %p92 = pneg %p86
    %p93 = scmp.eq.s32.totalorder %s9, 1
    %p94 = por %p92, %p93
    %p95 = scmp.ne.s32.totalorder %s87, %s90
    %p96 = scmp.eq.s32.totalorder %s9, 0
    %p97 = por %p95, %p96
    %p98 = scmp.ne.s32.totalorder %s87, %s90
    %p99 = scmp.eq.s32.totalorder %s14, 1
    %p100 = por %p98, %p99
    %p101 = scmp.ne.s32.totalorder %s90, %s91
    %p102 = scmp.eq.s32.totalorder %s14, 0
    %p103 = por %p101, %p102
    %p104 = scmp.ne.s32.totalorder %s90, %s91
    %p105 = scmp.eq.s32.totalorder %s15, 1
    %p106 = por %p104, %p105
    %p108 = scmp.ne.s32.totalorder %s91, %s107
    %p109 = scmp.eq.s32.totalorder %s15, 0
    %p110 = por %p108, %p109
    %p111 = scmp.le.s32.totalorder 1, %s9
    %p112 = scmp.lt.s32.totalorder %s9, 3
    %p113 = pnand %p111, %p112
    %p114 = pneg %p113
    // Predicated region
    $region9: #{conv_block_forward.2} parent=5 // pred_check
      _
    $region10: #{conv_block_forward.2} parent=5 // pred_check_branch
      %116 = sbr.rel (%p113) target = $region12
    $region11: #{conv_block_forward.2} parent=5 // pred_region
      %s117 = ssub.s32 %s9, 1
      // Predicated region
      $region13: #{conv_block_forward.2} parent=11 // pred_check
        %p118 = pneg %p56
      $region14: #{conv_block_forward.2} parent=11 // pred_check_branch
        %120 = sbr.rel (%p118) target = $region16
      $region15: #{conv_block_forward.2} parent=11 // pred_region
        _
      $region16: #{conv_block_forward.2} parent=11 // pred_fallthru
        _
      // Predicated region
      $region17: #{conv_block_forward.2} parent=11 // pred_check
        %p121 = pneg %p77
      $region18: #{conv_block_forward.2} parent=11 // pred_check_branch
        %123 = sbr.rel (%p121) target = $region20
      $region19: #{conv_block_forward.2} parent=11 // pred_region
        _
      $region20: #{conv_block_forward.2} parent=11 // pred_fallthru
        _
    $region12: #{conv_block_forward.2} parent=5 // pred_fallthru
      _
    %p124 = scmp.lt.s32.totalorder %s9, 2
    // Predicated region
    $region21: #{conv_block_forward.2} parent=5 // pred_check
      %p125 = pneg %p124
    $region22: #{conv_block_forward.2} parent=5 // pred_check_branch
      %127 = sbr.rel (%p125) target = $region24
    $region23: #{conv_block_forward.2} parent=5 // pred_region
      // Predicated region
      $region25: #{conv_block_forward.2} parent=23 // pred_check
        %p128 = pneg %p29
      $region26: #{conv_block_forward.2} parent=23 // pred_check_branch
        %130 = sbr.rel (%p128) target = $region28
      $region27: #{conv_block_forward.2} parent=23 // pred_region
        %s131 = smul.u32 224, %s9
        %p132 = scmp.lt.s32.totalorder %s131, 447
        %s133 = scalar_select %p132, %s131, 447
        %s134 = smul.addr %s133, 4
        %s135 = scalar_lea.vmem %s0, %s134
        %s136 = smul.u32 224, %s9
      $region28: #{conv_block_forward.2} parent=23 // pred_fallthru
        _
    $region24: #{conv_block_forward.2} parent=5 // pred_fallthru
      _
    %p137 = scmp.le.s32.totalorder 1, %s9
    %p138 = scmp.lt.s32.totalorder %s9, 3
    %p139 = pnand %p137, %p138
    %p140 = pneg %p139
    // Predicated region
    $region29: #{conv_block_forward.2} parent=5 // pred_check
      _
    $region30: #{conv_block_forward.2} parent=5 // pred_check_branch
      %142 = sbr.rel (%p139) target = $region32
    $region31: #{conv_block_forward.2} parent=5 // pred_region
      %s143 = ssub.s32 %s9, 1
      %s144 = smul.u32 224, %s14
      %p145 = scmp.lt.s32.totalorder %s144, 447
      %s146 = scalar_select %p145, %s144, 447
      %s147 = smul.addr %s146, 4
      %s148 = scalar_lea.vmem %s0, %s147
      %p149 = pneg %p35
      %p150 = pneg %p32
      %p151 = pneg %p56
      %p152 = pneg %p53
      %p153 = pneg %p77
      %p154 = pneg %p74
      %p155 = pneg %p103
      %p156 = pneg %p100
      %s157 = smul.u32 56, %s14
      %p158 = scmp.lt.s32.totalorder %s157, 111
      %s159 = scalar_select %p158, %s157, 111
      %s160 = smul.addr %s159, 4
      %s161 = scalar_lea.vmem %s3, %s160
      %s162 = smul.u32 224, %s14
      %p163 = scmp.lt.s32.totalorder %s162, 447
      %s164 = scalar_select %p163, %s162, 447
      %s165 = smul.addr %s164, 4
      %s166 = scalar_lea.vmem %s0, %s165
      %s167 = smul.u32 224, %s14
      %s168 = smul.u32 56, %s14
      %p169 = scmp.lt.s32.totalorder %s168, 111
      %s170 = scalar_select %p169, %s168, 111
      %s171 = smul.addr %s170, 4
      %s172 = scalar_lea.vmem %s3, %s171
      %s173 = smul.u32 56, %s14
      %v175 = vld [vmem:[%s166] sm:$0xf]
      %v176 = vld [vmem:[%s166 + $0x4] sm:$0xf]
      %v177 = vld [vmem:[%s166 + $0x8] sm:$0xf]
      %v178 = vld [vmem:[%s166 + $0xc] sm:$0xf]
      %v179 = vld [vmem:[%s166 + $0x10] sm:$0xf]
      %v180 = vld [vmem:[%s166 + $0x14] sm:$0xf]
      %v181 = vld [vmem:[%s166 + $0x18] sm:$0xf]
      %v182 = vld [vmem:[%s166 + $0x1c] sm:$0xf]
      %v183 = vld [vmem:[%s166 + $0x20] sm:$0xf]
      %v184 = vld [vmem:[%s166 + $0x24] sm:$0xf]
      %v185 = vld [vmem:[%s166 + $0x28] sm:$0xf]
      %v186 = vld [vmem:[%s166 + $0x2c] sm:$0xf]
      %v187 = vld [vmem:[%s166 + $0x30] sm:$0xf]
      %v188 = vld [vmem:[%s166 + $0x34] sm:$0xf]
      %v189 = vld [vmem:[%s166 + $0x38] sm:$0xf]
      %v190 = vld [vmem:[%s166 + $0x3c] sm:$0xf]
      %v191 = vld [vmem:[%s166 + $0x40] sm:$0xf]
      %v192 = vld [vmem:[%s166 + $0x44] sm:$0xf]
      %v193 = vld [vmem:[%s166 + $0x48] sm:$0xf]
      %v194 = vld [vmem:[%s166 + $0x4c] sm:$0xf]
      %v195 = vld [vmem:[%s166 + $0x50] sm:$0xf]
      %v196 = vld [vmem:[%s166 + $0x54] sm:$0xf]
      %v197 = vld [vmem:[%s166 + $0x58] sm:$0xf]
      %v198 = vld [vmem:[%s166 + $0x5c] sm:$0xf]
      %v199 = vld [vmem:[%s166 + $0x60] sm:$0xf]
      %v200 = vld [vmem:[%s166 + $0x64] sm:$0xf]
      %v201 = vld [vmem:[%s166 + $0x68] sm:$0xf]
      %v202 = vld [vmem:[%s166 + $0x6c] sm:$0xf]
      %v203 = vld [vmem:[%s166 + $0x70] sm:$0xf]
      %v204 = vld [vmem:[%s166 + $0x74] sm:$0xf]
      %v205 = vld [vmem:[%s166 + $0x78] sm:$0xf]
      %v206 = vld [vmem:[%s166 + $0x7c] sm:$0xf]
      %v207 = vld [vmem:[%s166 + $0x80] sm:$0xf]
      %v208 = vld [vmem:[%s166 + $0x84] sm:$0xf]
      %v209 = vld [vmem:[%s166 + $0x88] sm:$0xf]
      %v210 = vld [vmem:[%s166 + $0x8c] sm:$0xf]
      %v211 = vld [vmem:[%s166 + $0x90] sm:$0xf]
      %v212 = vld [vmem:[%s166 + $0x94] sm:$0xf]
      %v213 = vld [vmem:[%s166 + $0x98] sm:$0xf]
      %v214 = vld [vmem:[%s166 + $0x9c] sm:$0xf]
      %v215 = vld [vmem:[%s166 + $0xa0] sm:$0xf]
      %v216 = vld [vmem:[%s166 + $0xa4] sm:$0xf]
      %v217 = vld [vmem:[%s166 + $0xa8] sm:$0xf]
      %v218 = vld [vmem:[%s166 + $0xac] sm:$0xf]
      %v219 = vld [vmem:[%s166 + $0xb0] sm:$0xf]
      %v220 = vld [vmem:[%s166 + $0xb4] sm:$0xf]
      %v221 = vld [vmem:[%s166 + $0xb8] sm:$0xf]
      %v222 = vld [vmem:[%s166 + $0xbc] sm:$0xf]
      %v223 = vld [vmem:[%s166 + $0xc0] sm:$0xf]
      %v224 = vld [vmem:[%s166 + $0xc4] sm:$0xf]
      %v225 = vld [vmem:[%s166 + $0xc8] sm:$0xf]
      %v226 = vld [vmem:[%s166 + $0xcc] sm:$0xf]
      %v227 = vld [vmem:[%s166 + $0xd0] sm:$0xf]
      %v228 = vld [vmem:[%s166 + $0xd4] sm:$0xf]
      %v229 = vld [vmem:[%s166 + $0xd8] sm:$0xf]
      %v230 = vld [vmem:[%s166 + $0xdc] sm:$0xf]
      %v231 = vld [vmem:[%s166 + $0xe0] sm:$0xf]
      %v232 = vld [vmem:[%s166 + $0xe4] sm:$0xf]
      %v233 = vld [vmem:[%s166 + $0xe8] sm:$0xf]
      %v234 = vld [vmem:[%s166 + $0xec] sm:$0xf]
      %v235 = vld [vmem:[%s166 + $0xf0] sm:$0xf]
      %v236 = vld [vmem:[%s166 + $0xf4] sm:$0xf]
      %v237 = vld [vmem:[%s166 + $0xf8] sm:$0xf]
      %v238 = vld [vmem:[%s166 + $0xfc] sm:$0xf]
      %v239 = vld [vmem:[%s166 + $0x100] sm:$0xf]
      %v240 = vld [vmem:[%s166 + $0x104] sm:$0xf]
      %v241 = vld [vmem:[%s166 + $0x108] sm:$0xf]
      %v242 = vld [vmem:[%s166 + $0x10c] sm:$0xf]
      %v243 = vld [vmem:[%s166 + $0x110] sm:$0xf]
      %v244 = vld [vmem:[%s166 + $0x114] sm:$0xf]
      %v245 = vld [vmem:[%s166 + $0x118] sm:$0xf]
      %v246 = vld [vmem:[%s166 + $0x11c] sm:$0xf]
      %v247 = vld [vmem:[%s166 + $0x120] sm:$0xf]
      %v248 = vld [vmem:[%s166 + $0x124] sm:$0xf]
      %v249 = vld [vmem:[%s166 + $0x128] sm:$0xf]
      %v250 = vld [vmem:[%s166 + $0x12c] sm:$0xf]
      %v251 = vld [vmem:[%s166 + $0x130] sm:$0xf]
      %v252 = vld [vmem:[%s166 + $0x134] sm:$0xf]
      %v253 = vld [vmem:[%s166 + $0x138] sm:$0xf]
      %v254 = vld [vmem:[%s166 + $0x13c] sm:$0xf]
      %v255 = vld [vmem:[%s166 + $0x140] sm:$0xf]
      %v256 = vld [vmem:[%s166 + $0x144] sm:$0xf]
      %v257 = vld [vmem:[%s166 + $0x148] sm:$0xf]
      %v258 = vld [vmem:[%s166 + $0x14c] sm:$0xf]
      %v259 = vld [vmem:[%s166 + $0x150] sm:$0xf]
      %v260 = vld [vmem:[%s166 + $0x154] sm:$0xf]
      %v261 = vld [vmem:[%s166 + $0x158] sm:$0xf]
      %v262 = vld [vmem:[%s166 + $0x15c] sm:$0xf]
      %v263 = vld [vmem:[%s166 + $0x160] sm:$0xf]
      %v264 = vld [vmem:[%s166 + $0x164] sm:$0xf]
      %v265 = vld [vmem:[%s166 + $0x168] sm:$0xf]
      %v266 = vld [vmem:[%s166 + $0x16c] sm:$0xf]
      %v267 = vld [vmem:[%s166 + $0x170] sm:$0xf]
      %v268 = vld [vmem:[%s166 + $0x174] sm:$0xf]
      %v269 = vld [vmem:[%s166 + $0x178] sm:$0xf]
      %v270 = vld [vmem:[%s166 + $0x17c] sm:$0xf]
      %v271 = vld [vmem:[%s166 + $0x180] sm:$0xf]
      %v272 = vld [vmem:[%s166 + $0x184] sm:$0xf]
      %v273 = vld [vmem:[%s166 + $0x188] sm:$0xf]
      %v274 = vld [vmem:[%s166 + $0x18c] sm:$0xf]
      %v275 = vld [vmem:[%s166 + $0x190] sm:$0xf]
      %v276 = vld [vmem:[%s166 + $0x194] sm:$0xf]
      %v277 = vld [vmem:[%s166 + $0x198] sm:$0xf]
      %v278 = vld [vmem:[%s166 + $0x19c] sm:$0xf]
      %v279 = vld [vmem:[%s166 + $0x1a0] sm:$0xf]
      %v280 = vld [vmem:[%s166 + $0x1a4] sm:$0xf]
      %v281 = vld [vmem:[%s166 + $0x1a8] sm:$0xf]
      %v282 = vld [vmem:[%s166 + $0x1ac] sm:$0xf]
      %v283 = vld [vmem:[%s166 + $0x1b0] sm:$0xf]
      %v284 = vld [vmem:[%s166 + $0x1b4] sm:$0xf]
      %v285 = vld [vmem:[%s166 + $0x1b8] sm:$0xf]
      %v286 = vld [vmem:[%s166 + $0x1bc] sm:$0xf]
      %v287 = vld [vmem:[%s166 + $0x1c0] sm:$0xf]
      %v288 = vld [vmem:[%s166 + $0x1c4] sm:$0xf]
      %v289 = vld [vmem:[%s166 + $0x1c8] sm:$0xf]
      %v290 = vld [vmem:[%s166 + $0x1cc] sm:$0xf]
      %v291 = vld [vmem:[%s166 + $0x1d0] sm:$0xf]
      %v292 = vld [vmem:[%s166 + $0x1d4] sm:$0xf]
      %v293 = vld [vmem:[%s166 + $0x1d8] sm:$0xf]
      %v294 = vld [vmem:[%s166 + $0x1dc] sm:$0xf]
      %v295 = vld [vmem:[%s166 + $0x1e0] sm:$0xf]
      %v296 = vld [vmem:[%s166 + $0x1e4] sm:$0xf]
      %v297 = vld [vmem:[%s166 + $0x1e8] sm:$0xf]
      %v298 = vld [vmem:[%s166 + $0x1ec] sm:$0xf]
      %v299 = vld [vmem:[%s166 + $0x1f0] sm:$0xf]
      %v300 = vld [vmem:[%s166 + $0x1f4] sm:$0xf]
      %v301 = vld [vmem:[%s166 + $0x1f8] sm:$0xf]
      %v302 = vld [vmem:[%s166 + $0x1fc] sm:$0xf]
      %v303 = vld [vmem:[%s166 + $0x200] sm:$0xf]
      %v304 = vld [vmem:[%s166 + $0x204] sm:$0xf]
      %v305 = vld [vmem:[%s166 + $0x208] sm:$0xf]
      %v306 = vld [vmem:[%s166 + $0x20c] sm:$0xf]
      %v307 = vld [vmem:[%s166 + $0x210] sm:$0xf]
      %v308 = vld [vmem:[%s166 + $0x214] sm:$0xf]
      %v309 = vld [vmem:[%s166 + $0x218] sm:$0xf]
      %v310 = vld [vmem:[%s166 + $0x21c] sm:$0xf]
      %v311 = vld [vmem:[%s166 + $0x220] sm:$0xf]
      %v312 = vld [vmem:[%s166 + $0x224] sm:$0xf]
      %v313 = vld [vmem:[%s166 + $0x228] sm:$0xf]
      %v314 = vld [vmem:[%s166 + $0x22c] sm:$0xf]
      %v315 = vld [vmem:[%s166 + $0x230] sm:$0xf]
      %v316 = vld [vmem:[%s166 + $0x234] sm:$0xf]
      %v317 = vld [vmem:[%s166 + $0x238] sm:$0xf]
      %v318 = vld [vmem:[%s166 + $0x23c] sm:$0xf]
      %v319 = vld [vmem:[%s166 + $0x240] sm:$0xf]
      %v320 = vld [vmem:[%s166 + $0x244] sm:$0xf]
      %v321 = vld [vmem:[%s166 + $0x248] sm:$0xf]
      %v322 = vld [vmem:[%s166 + $0x24c] sm:$0xf]
      %v323 = vld [vmem:[%s166 + $0x250] sm:$0xf]
      %v324 = vld [vmem:[%s166 + $0x254] sm:$0xf]
      %v325 = vld [vmem:[%s166 + $0x258] sm:$0xf]
      %v326 = vld [vmem:[%s166 + $0x25c] sm:$0xf]
      %v327 = vld [vmem:[%s166 + $0x260] sm:$0xf]
      %v328 = vld [vmem:[%s166 + $0x264] sm:$0xf]
      %v329 = vld [vmem:[%s166 + $0x268] sm:$0xf]
      %v330 = vld [vmem:[%s166 + $0x26c] sm:$0xf]
      %v331 = vld [vmem:[%s166 + $0x270] sm:$0xf]
      %v332 = vld [vmem:[%s166 + $0x274] sm:$0xf]
      %v333 = vld [vmem:[%s166 + $0x278] sm:$0xf]
      %v334 = vld [vmem:[%s166 + $0x27c] sm:$0xf]
      %v335 = vld [vmem:[%s166 + $0x280] sm:$0xf]
      %v336 = vld [vmem:[%s166 + $0x284] sm:$0xf]
      %v337 = vld [vmem:[%s166 + $0x288] sm:$0xf]
      %v338 = vld [vmem:[%s166 + $0x28c] sm:$0xf]
      %v339 = vld [vmem:[%s166 + $0x290] sm:$0xf]
      %v340 = vld [vmem:[%s166 + $0x294] sm:$0xf]
      %v341 = vld [vmem:[%s166 + $0x298] sm:$0xf]
      %v342 = vld [vmem:[%s166 + $0x29c] sm:$0xf]
      %v343 = vld [vmem:[%s166 + $0x2a0] sm:$0xf]
      %v344 = vld [vmem:[%s166 + $0x2a4] sm:$0xf]
      %v345 = vld [vmem:[%s166 + $0x2a8] sm:$0xf]
      %v346 = vld [vmem:[%s166 + $0x2ac] sm:$0xf]
      %v347 = vld [vmem:[%s166 + $0x2b0] sm:$0xf]
      %v348 = vld [vmem:[%s166 + $0x2b4] sm:$0xf]
      %v349 = vld [vmem:[%s166 + $0x2b8] sm:$0xf]
      %v350 = vld [vmem:[%s166 + $0x2bc] sm:$0xf]
      %v351 = vld [vmem:[%s166 + $0x2c0] sm:$0xf]
      %v352 = vld [vmem:[%s166 + $0x2c4] sm:$0xf]
      %v353 = vld [vmem:[%s166 + $0x2c8] sm:$0xf]
      %v354 = vld [vmem:[%s166 + $0x2cc] sm:$0xf]
      %v355 = vld [vmem:[%s166 + $0x2d0] sm:$0xf]
      %v356 = vld [vmem:[%s166 + $0x2d4] sm:$0xf]
      %v357 = vld [vmem:[%s166 + $0x2d8] sm:$0xf]
      %v358 = vld [vmem:[%s166 + $0x2dc] sm:$0xf]
      %v359 = vld [vmem:[%s166 + $0x2e0] sm:$0xf]
      %v360 = vld [vmem:[%s166 + $0x2e4] sm:$0xf]
      %v361 = vld [vmem:[%s166 + $0x2e8] sm:$0xf]
      %v362 = vld [vmem:[%s166 + $0x2ec] sm:$0xf]
      %v363 = vld [vmem:[%s166 + $0x2f0] sm:$0xf]
      %v364 = vld [vmem:[%s166 + $0x2f4] sm:$0xf]
      %v365 = vld [vmem:[%s166 + $0x2f8] sm:$0xf]
      %v366 = vld [vmem:[%s166 + $0x2fc] sm:$0xf]
      %v367 = vld [vmem:[%s166 + $0x300] sm:$0xf]
      %v368 = vld [vmem:[%s166 + $0x304] sm:$0xf]
      %v369 = vld [vmem:[%s166 + $0x308] sm:$0xf]
      %v370 = vld [vmem:[%s166 + $0x30c] sm:$0xf]
      %v371 = vld [vmem:[%s166 + $0x310] sm:$0xf]
      %v372 = vld [vmem:[%s166 + $0x314] sm:$0xf]
      %v373 = vld [vmem:[%s166 + $0x318] sm:$0xf]
      %v374 = vld [vmem:[%s166 + $0x31c] sm:$0xf]
      %v375 = vld [vmem:[%s166 + $0x320] sm:$0xf]
      %v376 = vld [vmem:[%s166 + $0x324] sm:$0xf]
      %v377 = vld [vmem:[%s166 + $0x328] sm:$0xf]
      %v378 = vld [vmem:[%s166 + $0x32c] sm:$0xf]
      %v379 = vld [vmem:[%s166 + $0x330] sm:$0xf]
      %v380 = vld [vmem:[%s166 + $0x334] sm:$0xf]
      %v381 = vld [vmem:[%s166 + $0x338] sm:$0xf]
      %v382 = vld [vmem:[%s166 + $0x33c] sm:$0xf]
      %v383 = vld [vmem:[%s166 + $0x340] sm:$0xf]
      %v384 = vld [vmem:[%s166 + $0x344] sm:$0xf]
      %v385 = vld [vmem:[%s166 + $0x348] sm:$0xf]
      %v386 = vld [vmem:[%s166 + $0x34c] sm:$0xf]
      %v387 = vld [vmem:[%s166 + $0x350] sm:$0xf]
      %v388 = vld [vmem:[%s166 + $0x354] sm:$0xf]
      %v389 = vld [vmem:[%s166 + $0x358] sm:$0xf]
      %v390 = vld [vmem:[%s166 + $0x35c] sm:$0xf]
      %v391 = vld [vmem:[%s166 + $0x360] sm:$0xf]
      %v392 = vld [vmem:[%s166 + $0x364] sm:$0xf]
      %v393 = vld [vmem:[%s166 + $0x368] sm:$0xf]
      %v394 = vld [vmem:[%s166 + $0x36c] sm:$0xf]
      %v395 = vld [vmem:[%s166 + $0x370] sm:$0xf]
      %v396 = vld [vmem:[%s166 + $0x374] sm:$0xf]
      %v397 = vld [vmem:[%s166 + $0x378] sm:$0xf]
      %v398 = vld [vmem:[%s166 + $0x37c] sm:$0xf]
      %v399 = vld [vmem:[%s1] sm:$0xf]
      %v400 = vld [vmem:[%s1 + $0x4] sm:$0xf]
      %v401 = vld [vmem:[%s1 + $0x8] sm:$0xf]
      %v402 = vld [vmem:[%s1 + $0xc] sm:$0xf]
      %v403 = vld [vmem:[%s1 + $0x10] sm:$0xf]
      %v404 = vld [vmem:[%s1 + $0x14] sm:$0xf]
      %v405 = vld [vmem:[%s1 + $0x18] sm:$0xf]
      %v406 = vld [vmem:[%s1 + $0x1c] sm:$0xf]
      %v407 = vld [vmem:[%s1 + $0x20] sm:$0xf]
      %v408 = vld [vmem:[%s1 + $0x24] sm:$0x3]
      %v633 = vunpack.c.l.b16 %v175
      %v634 = vunpack.c.l.b16 %v176
      %v635 = vunpack.c.l.b16 %v177
      %v636 = vunpack.c.l.b16 %v178
      %v637 = vunpack.c.l.b16 %v179
      %v638 = vunpack.c.l.b16 %v180
      %v639 = vunpack.c.l.b16 %v181
      %v640 = vunpack.c.l.b16 %v182
      %v641 = vunpack.c.l.b16 %v183
      %v642 = vunpack.c.l.b16 %v184
      %v643 = vunpack.c.l.b16 %v185
      %v644 = vunpack.c.l.b16 %v186
      %v645 = vunpack.c.l.b16 %v187
      %v646 = vunpack.c.l.b16 %v188
      %v647 = vunpack.c.l.b16 %v189
      %v648 = vunpack.c.l.b16 %v190
      %v649 = vunpack.c.l.b16 %v191
      %v650 = vunpack.c.l.b16 %v192
      %v651 = vunpack.c.l.b16 %v193
      %v652 = vunpack.c.l.b16 %v194
      %v653 = vunpack.c.l.b16 %v195
      %v654 = vunpack.c.l.b16 %v196
      %v655 = vunpack.c.l.b16 %v197
      %v656 = vunpack.c.l.b16 %v198
      %v657 = vunpack.c.l.b16 %v199
      %v658 = vunpack.c.l.b16 %v200
      %v659 = vunpack.c.l.b16 %v201
      %v660 = vunpack.c.l.b16 %v202
      %v661 = vunpack.c.l.b16 %v203
      %v662 = vunpack.c.l.b16 %v204
      %v663 = vunpack.c.l.b16 %v205
      %v664 = vunpack.c.l.b16 %v206
      %v665 = vunpack.c.l.b16 %v207
      %v666 = vunpack.c.l.b16 %v208
      %v667 = vunpack.c.l.b16 %v209
      %v668 = vunpack.c.l.b16 %v210
      %v669 = vunpack.c.l.b16 %v211
      %v670 = vunpack.c.l.b16 %v212
      %v671 = vunpack.c.l.b16 %v213
      %v672 = vunpack.c.l.b16 %v214
      %v673 = vunpack.c.l.b16 %v215
      %v674 = vunpack.c.l.b16 %v216
      %v675 = vunpack.c.l.b16 %v217
      %v676 = vunpack.c.l.b16 %v218
      %v677 = vunpack.c.l.b16 %v219
      %v678 = vunpack.c.l.b16 %v220
      %v679 = vunpack.c.l.b16 %v221
      %v680 = vunpack.c.l.b16 %v222
      %v681 = vunpack.c.l.b16 %v223
      %v682 = vunpack.c.l.b16 %v224
      %v683 = vunpack.c.l.b16 %v225
      %v684 = vunpack.c.l.b16 %v226
      %v685 = vunpack.c.l.b16 %v227
      %v686 = vunpack.c.l.b16 %v228
      %v687 = vunpack.c.l.b16 %v229
      %v688 = vunpack.c.l.b16 %v230
      %v689 = vunpack.c.l.b16 %v231
      %v690 = vunpack.c.l.b16 %v232
      %v691 = vunpack.c.l.b16 %v233
      %v692 = vunpack.c.l.b16 %v234
      %v693 = vunpack.c.l.b16 %v235
      %v694 = vunpack.c.l.b16 %v236
      %v695 = vunpack.c.l.b16 %v237
      %v696 = vunpack.c.l.b16 %v238
      %v697 = vunpack.c.l.b16 %v239
      %v698 = vunpack.c.l.b16 %v240
      %v699 = vunpack.c.l.b16 %v241
      %v700 = vunpack.c.l.b16 %v242
      %v701 = vunpack.c.l.b16 %v243
      %v702 = vunpack.c.l.b16 %v244
      %v703 = vunpack.c.l.b16 %v245
      %v704 = vunpack.c.l.b16 %v246
      %v705 = vunpack.c.l.b16 %v247
      %v706 = vunpack.c.l.b16 %v248
      %v707 = vunpack.c.l.b16 %v249
      %v708 = vunpack.c.l.b16 %v250
      %v709 = vunpack.c.l.b16 %v251
      %v710 = vunpack.c.l.b16 %v252
      %v711 = vunpack.c.l.b16 %v253
      %v712 = vunpack.c.l.b16 %v254
      %v713 = vunpack.c.l.b16 %v255
      %v714 = vunpack.c.l.b16 %v256
      %v715 = vunpack.c.l.b16 %v257
      %v716 = vunpack.c.l.b16 %v258
      %v717 = vunpack.c.l.b16 %v259
      %v718 = vunpack.c.l.b16 %v260
      %v719 = vunpack.c.l.b16 %v261
      %v720 = vunpack.c.l.b16 %v262
      %v721 = vunpack.c.l.b16 %v263
      %v722 = vunpack.c.l.b16 %v264
      %v723 = vunpack.c.l.b16 %v265
      %v724 = vunpack.c.l.b16 %v266
      %v725 = vunpack.c.l.b16 %v267
      %v726 = vunpack.c.l.b16 %v268
      %v727 = vunpack.c.l.b16 %v269
      %v728 = vunpack.c.l.b16 %v270
      %v729 = vunpack.c.l.b16 %v271
      %v730 = vunpack.c.l.b16 %v272
      %v731 = vunpack.c.l.b16 %v273
      %v732 = vunpack.c.l.b16 %v274
      %v733 = vunpack.c.l.b16 %v275
      %v734 = vunpack.c.l.b16 %v276
      %v735 = vunpack.c.l.b16 %v277
      %v736 = vunpack.c.l.b16 %v278
      %v737 = vunpack.c.l.b16 %v279
      %v738 = vunpack.c.l.b16 %v280
      %v739 = vunpack.c.l.b16 %v281
      %v740 = vunpack.c.l.b16 %v282
      %v741 = vunpack.c.l.b16 %v283
      %v742 = vunpack.c.l.b16 %v284
      %v743 = vunpack.c.l.b16 %v285
      %v744 = vunpack.c.l.b16 %v286
      %v745 = vunpack.c.l.b16 %v287
      %v746 = vunpack.c.l.b16 %v288
      %v747 = vunpack.c.l.b16 %v289
      %v748 = vunpack.c.l.b16 %v290
      %v749 = vunpack.c.l.b16 %v291
      %v750 = vunpack.c.l.b16 %v292
      %v751 = vunpack.c.l.b16 %v293
      %v752 = vunpack.c.l.b16 %v294
      %v753 = vunpack.c.l.b16 %v295
      %v754 = vunpack.c.l.b16 %v296
      %v755 = vunpack.c.l.b16 %v297
      %v756 = vunpack.c.l.b16 %v298
      %v757 = vunpack.c.l.b16 %v299
      %v758 = vunpack.c.l.b16 %v300
      %v759 = vunpack.c.l.b16 %v301
      %v760 = vunpack.c.l.b16 %v302
      %v761 = vunpack.c.l.b16 %v303
      %v762 = vunpack.c.l.b16 %v304
      %v763 = vunpack.c.l.b16 %v305
      %v764 = vunpack.c.l.b16 %v306
      %v765 = vunpack.c.l.b16 %v307
      %v766 = vunpack.c.l.b16 %v308
      %v767 = vunpack.c.l.b16 %v309
      %v768 = vunpack.c.l.b16 %v310
      %v769 = vunpack.c.l.b16 %v311
      %v770 = vunpack.c.l.b16 %v312
      %v771 = vunpack.c.l.b16 %v313
      %v772 = vunpack.c.l.b16 %v314
      %v773 = vunpack.c.l.b16 %v315
      %v774 = vunpack.c.l.b16 %v316
      %v775 = vunpack.c.l.b16 %v317
      %v776 = vunpack.c.l.b16 %v318
      %v777 = vunpack.c.l.b16 %v319
      %v778 = vunpack.c.l.b16 %v320
      %v779 = vunpack.c.l.b16 %v321
      %v780 = vunpack.c.l.b16 %v322
      %v781 = vunpack.c.l.b16 %v323
      %v782 = vunpack.c.l.b16 %v324
      %v783 = vunpack.c.l.b16 %v325
      %v784 = vunpack.c.l.b16 %v326
      %v785 = vunpack.c.l.b16 %v327
      %v786 = vunpack.c.l.b16 %v328
      %v787 = vunpack.c.l.b16 %v329
      %v788 = vunpack.c.l.b16 %v330
      %v789 = vunpack.c.l.b16 %v331
      %v790 = vunpack.c.l.b16 %v332
      %v791 = vunpack.c.l.b16 %v333
      %v792 = vunpack.c.l.b16 %v334
      %v793 = vunpack.c.l.b16 %v335
      %v794 = vunpack.c.l.b16 %v336
      %v795 = vunpack.c.l.b16 %v337
      %v796 = vunpack.c.l.b16 %v338
      %v797 = vunpack.c.l.b16 %v339
      %v798 = vunpack.c.l.b16 %v340
      %v799 = vunpack.c.l.b16 %v341
      %v800 = vunpack.c.l.b16 %v342
      %v801 = vunpack.c.l.b16 %v343
      %v802 = vunpack.c.l.b16 %v344
      %v803 = vunpack.c.l.b16 %v345
      %v804 = vunpack.c.l.b16 %v346
      %v805 = vunpack.c.l.b16 %v347
      %v806 = vunpack.c.l.b16 %v348
      %v807 = vunpack.c.l.b16 %v349
      %v808 = vunpack.c.l.b16 %v350
      %v809 = vunpack.c.l.b16 %v351
      %v810 = vunpack.c.l.b16 %v352
      %v811 = vunpack.c.l.b16 %v353
      %v812 = vunpack.c.l.b16 %v354
      %v813 = vunpack.c.l.b16 %v355
      %v814 = vunpack.c.l.b16 %v356
      %v815 = vunpack.c.l.b16 %v357
      %v816 = vunpack.c.l.b16 %v358
      %v817 = vunpack.c.l.b16 %v359
      %v818 = vunpack.c.l.b16 %v360
      %v819 = vunpack.c.l.b16 %v361
      %v820 = vunpack.c.l.b16 %v362
      %v821 = vunpack.c.l.b16 %v363
      %v822 = vunpack.c.l.b16 %v364
      %v823 = vunpack.c.l.b16 %v365
      %v824 = vunpack.c.l.b16 %v366
      %v825 = vunpack.c.l.b16 %v367
      %v826 = vunpack.c.l.b16 %v368
      %v827 = vunpack.c.l.b16 %v369
      %v828 = vunpack.c.l.b16 %v370
      %v829 = vunpack.c.l.b16 %v371
      %v830 = vunpack.c.l.b16 %v372
      %v831 = vunpack.c.l.b16 %v373
      %v832 = vunpack.c.l.b16 %v374
      %v833 = vunpack.c.l.b16 %v375
      %v834 = vunpack.c.l.b16 %v376
      %v835 = vunpack.c.l.b16 %v377
      %v836 = vunpack.c.l.b16 %v378
      %v837 = vunpack.c.l.b16 %v379
      %v838 = vunpack.c.l.b16 %v380
      %v839 = vunpack.c.l.b16 %v381
      %v840 = vunpack.c.l.b16 %v382
      %v841 = vunpack.c.l.b16 %v383
      %v842 = vunpack.c.l.b16 %v384
      %v843 = vunpack.c.l.b16 %v385
      %v844 = vunpack.c.l.b16 %v386
      %v845 = vunpack.c.l.b16 %v387
      %v846 = vunpack.c.l.b16 %v388
      %v847 = vunpack.c.l.b16 %v389
      %v848 = vunpack.c.l.b16 %v390
      %v849 = vunpack.c.l.b16 %v391
      %v850 = vunpack.c.l.b16 %v392
      %v851 = vunpack.c.l.b16 %v393
      %v852 = vunpack.c.l.b16 %v394
      %v853 = vunpack.c.l.b16 %v395
      %v854 = vunpack.c.l.b16 %v396
      %v855 = vunpack.c.l.b16 %v397
      %v856 = vunpack.c.l.b16 %v398
      %v857 = vpack.c.b16 %v634, %v633
      %v858 = vpack.c.b16 %v636, %v635
      %v859 = vpack.c.b16 %v638, %v637
      %v860 = vpack.c.b16 %v640, %v639
      %v861 = vpack.c.b16 %v642, %v641
      %v862 = vpack.c.b16 %v644, %v643
      %v863 = vpack.c.b16 %v646, %v645
      %v864 = vpack.c.b16 %v648, %v647
      %v865 = vpack.c.b16 %v650, %v649
      %v866 = vpack.c.b16 %v652, %v651
      %v867 = vpack.c.b16 %v654, %v653
      %v868 = vpack.c.b16 %v656, %v655
      %v869 = vpack.c.b16 %v658, %v657
      %v870 = vpack.c.b16 %v660, %v659
      %v871 = vpack.c.b16 %v662, %v661
      %v872 = vpack.c.b16 %v664, %v663
      %v873 = vpack.c.b16 %v666, %v665
      %v874 = vpack.c.b16 %v668, %v667
      %v875 = vpack.c.b16 %v670, %v669
      %v876 = vpack.c.b16 %v672, %v671
      %v877 = vpack.c.b16 %v674, %v673
      %v878 = vpack.c.b16 %v676, %v675
      %v879 = vpack.c.b16 %v678, %v677
      %v880 = vpack.c.b16 %v680, %v679
      %v881 = vpack.c.b16 %v682, %v681
      %v882 = vpack.c.b16 %v684, %v683
      %v883 = vpack.c.b16 %v686, %v685
      %v884 = vpack.c.b16 %v688, %v687
      %v885 = vpack.c.b16 %v690, %v689
      %v886 = vpack.c.b16 %v692, %v691
      %v887 = vpack.c.b16 %v694, %v693
      %v888 = vpack.c.b16 %v696, %v695
      %v889 = vpack.c.b16 %v698, %v697
      %v890 = vpack.c.b16 %v700, %v699
      %v891 = vpack.c.b16 %v702, %v701
      %v892 = vpack.c.b16 %v704, %v703
      %v893 = vpack.c.b16 %v706, %v705
      %v894 = vpack.c.b16 %v708, %v707
      %v895 = vpack.c.b16 %v710, %v709
      %v896 = vpack.c.b16 %v712, %v711
      %v897 = vpack.c.b16 %v714, %v713
      %v898 = vpack.c.b16 %v716, %v715
      %v899 = vpack.c.b16 %v718, %v717
      %v900 = vpack.c.b16 %v720, %v719
      %v901 = vpack.c.b16 %v722, %v721
      %v902 = vpack.c.b16 %v724, %v723
      %v903 = vpack.c.b16 %v726, %v725
      %v904 = vpack.c.b16 %v728, %v727
      %v905 = vpack.c.b16 %v730, %v729
      %v906 = vpack.c.b16 %v732, %v731
      %v907 = vpack.c.b16 %v734, %v733
      %v908 = vpack.c.b16 %v736, %v735
      %v909 = vpack.c.b16 %v738, %v737
      %v910 = vpack.c.b16 %v740, %v739
      %v911 = vpack.c.b16 %v742, %v741
      %v912 = vpack.c.b16 %v744, %v743
      %v913 = vpack.c.b16 %v746, %v745
      %v914 = vpack.c.b16 %v748, %v747
      %v915 = vpack.c.b16 %v750, %v749
      %v916 = vpack.c.b16 %v752, %v751
      %v917 = vpack.c.b16 %v754, %v753
      %v918 = vpack.c.b16 %v756, %v755
      %v919 = vpack.c.b16 %v758, %v757
      %v920 = vpack.c.b16 %v760, %v759
      %v921 = vpack.c.b16 %v762, %v761
      %v922 = vpack.c.b16 %v764, %v763
      %v923 = vpack.c.b16 %v766, %v765
      %v924 = vpack.c.b16 %v768, %v767
      %v925 = vpack.c.b16 %v770, %v769
      %v926 = vpack.c.b16 %v772, %v771
      %v927 = vpack.c.b16 %v774, %v773
      %v928 = vpack.c.b16 %v776, %v775
      %v929 = vpack.c.b16 %v778, %v777
      %v930 = vpack.c.b16 %v780, %v779
      %v931 = vpack.c.b16 %v782, %v781
      %v932 = vpack.c.b16 %v784, %v783
      %v933 = vpack.c.b16 %v786, %v785
      %v934 = vpack.c.b16 %v788, %v787
      %v935 = vpack.c.b16 %v790, %v789
      %v936 = vpack.c.b16 %v792, %v791
      %v937 = vpack.c.b16 %v794, %v793
      %v938 = vpack.c.b16 %v796, %v795
      %v939 = vpack.c.b16 %v798, %v797
      %v940 = vpack.c.b16 %v800, %v799
      %v941 = vpack.c.b16 %v802, %v801
      %v942 = vpack.c.b16 %v804, %v803
      %v943 = vpack.c.b16 %v806, %v805
      %v944 = vpack.c.b16 %v808, %v807
      %v945 = vpack.c.b16 %v810, %v809
      %v946 = vpack.c.b16 %v812, %v811
      %v947 = vpack.c.b16 %v814, %v813
      %v948 = vpack.c.b16 %v816, %v815
      %v949 = vpack.c.b16 %v818, %v817
      %v950 = vpack.c.b16 %v820, %v819
      %v951 = vpack.c.b16 %v822, %v821
      %v952 = vpack.c.b16 %v824, %v823
      %v953 = vpack.c.b16 %v826, %v825
      %v954 = vpack.c.b16 %v828, %v827
      %v955 = vpack.c.b16 %v830, %v829
      %v956 = vpack.c.b16 %v832, %v831
      %v957 = vpack.c.b16 %v834, %v833
      %v958 = vpack.c.b16 %v836, %v835
      %v959 = vpack.c.b16 %v838, %v837
      %v960 = vpack.c.b16 %v840, %v839
      %v961 = vpack.c.b16 %v842, %v841
      %v962 = vpack.c.b16 %v844, %v843
      %v963 = vpack.c.b16 %v846, %v845
      %v964 = vpack.c.b16 %v848, %v847
      %v965 = vpack.c.b16 %v850, %v849
      %v966 = vpack.c.b16 %v852, %v851
      %v967 = vpack.c.b16 %v854, %v853
      %v968 = vpack.c.b16 %v856, %v855
      %v979 = vunpack.c.l.b16 %v399
      %v980 = vunpack.c.l.b16 %v400
      %v981 = vunpack.c.l.b16 %v401
      %v982 = vunpack.c.l.b16 %v402
      %v983 = vunpack.c.l.b16 %v403
      %v984 = vunpack.c.l.b16 %v404
      %v985 = vunpack.c.l.b16 %v405
      %v986 = vunpack.c.l.b16 %v406
      %v987 = vunpack.c.l.b16 %v407
      %v988 = vunpack.c.l.b16 %v408
      %v989 = vpack.c.b16 %v980, %v979
      %v990 = vpack.c.b16 %v982, %v981
      %v991 = vpack.c.b16 %v984, %v983
      %v992 = vpack.c.b16 %v986, %v985
      %v993 = vpack.c.b16 %v988, %v987
      %vm998 = vcmask 613376
      %v1000 = vsel %vm998, %v857, 0
      %v1003 = vsel %vm998, %v858, 0
      %v1006 = vsel %vm998, %v859, 0
      %v1009 = vsel %vm998, %v860, 0
      %v1012 = vsel %vm998, %v861, 0
      %v1015 = vsel %vm998, %v862, 0
      %v1018 = vsel %vm998, %v863, 0
      %v1021 = vsel %vm998, %v864, 0
      %v1024 = vsel %vm998, %v865, 0
      %v1027 = vsel %vm998, %v866, 0
      %v1030 = vsel %vm998, %v867, 0
      %v1033 = vsel %vm998, %v868, 0
      %v1036 = vsel %vm998, %v869, 0
      %v1039 = vsel %vm998, %v870, 0
      %v1042 = vsel %vm998, %v871, 0
      %v1045 = vsel %vm998, %v872, 0
      %v1048 = vsel %vm998, %v873, 0
      %v1051 = vsel %vm998, %v874, 0
      %v1054 = vsel %vm998, %v875, 0
      %v1057 = vsel %vm998, %v876, 0
      %v1060 = vsel %vm998, %v877, 0
      %v1063 = vsel %vm998, %v878, 0
      %v1066 = vsel %vm998, %v879, 0
      %v1069 = vsel %vm998, %v880, 0
      %v1072 = vsel %vm998, %v881, 0
      %v1075 = vsel %vm998, %v882, 0
      %v1078 = vsel %vm998, %v883, 0
      %v1081 = vsel %vm998, %v884, 0
      %v1084 = vsel %vm998, %v885, 0
      %v1087 = vsel %vm998, %v886, 0
      %v1090 = vsel %vm998, %v887, 0
      %v1093 = vsel %vm998, %v888, 0
      %v1096 = vsel %vm998, %v889, 0
      %v1099 = vsel %vm998, %v890, 0
      %v1102 = vsel %vm998, %v891, 0
      %v1105 = vsel %vm998, %v892, 0
      %v1108 = vsel %vm998, %v893, 0
      %v1111 = vsel %vm998, %v894, 0
      %v1114 = vsel %vm998, %v895, 0
      %v1117 = vsel %vm998, %v896, 0
      %v1120 = vsel %vm998, %v897, 0
      %v1123 = vsel %vm998, %v898, 0
      %v1126 = vsel %vm998, %v899, 0
      %v1129 = vsel %vm998, %v900, 0
      %v1132 = vsel %vm998, %v901, 0
      %v1135 = vsel %vm998, %v902, 0
      %v1138 = vsel %vm998, %v903, 0
      %v1141 = vsel %vm998, %v904, 0
      %v1144 = vsel %vm998, %v905, 0
      %v1147 = vsel %vm998, %v906, 0
      %v1150 = vsel %vm998, %v907, 0
      %v1153 = vsel %vm998, %v908, 0
      %v1156 = vsel %vm998, %v909, 0
      %v1159 = vsel %vm998, %v910, 0
      %v1162 = vsel %vm998, %v911, 0
      %v1165 = vsel %vm998, %v912, 0
      %v1168 = vsel %vm998, %v913, 0
      %v1171 = vsel %vm998, %v914, 0
      %v1174 = vsel %vm998, %v915, 0
      %v1177 = vsel %vm998, %v916, 0
      %v1180 = vsel %vm998, %v917, 0
      %v1183 = vsel %vm998, %v918, 0
      %v1186 = vsel %vm998, %v919, 0
      %v1189 = vsel %vm998, %v920, 0
      %v1192 = vsel %vm998, %v921, 0
      %v1195 = vsel %vm998, %v922, 0
      %v1198 = vsel %vm998, %v923, 0
      %v1201 = vsel %vm998, %v924, 0
      %v1204 = vsel %vm998, %v925, 0
      %v1207 = vsel %vm998, %v926, 0
      %v1210 = vsel %vm998, %v927, 0
      %v1213 = vsel %vm998, %v928, 0
      %v1216 = vsel %vm998, %v929, 0
      %v1219 = vsel %vm998, %v930, 0
      %v1222 = vsel %vm998, %v931, 0
      %v1225 = vsel %vm998, %v932, 0
      %v1228 = vsel %vm998, %v933, 0
      %v1231 = vsel %vm998, %v934, 0
      %v1234 = vsel %vm998, %v935, 0
      %v1237 = vsel %vm998, %v936, 0
      %v1240 = vsel %vm998, %v937, 0
      %v1243 = vsel %vm998, %v938, 0
      %v1246 = vsel %vm998, %v939, 0
      %v1249 = vsel %vm998, %v940, 0
      %v1252 = vsel %vm998, %v941, 0
      %v1255 = vsel %vm998, %v942, 0
      %v1258 = vsel %vm998, %v943, 0
      %v1261 = vsel %vm998, %v944, 0
      %v1264 = vsel %vm998, %v945, 0
      %v1267 = vsel %vm998, %v946, 0
      %v1270 = vsel %vm998, %v947, 0
      %v1273 = vsel %vm998, %v948, 0
      %v1276 = vsel %vm998, %v949, 0
      %v1279 = vsel %vm998, %v950, 0
      %v1282 = vsel %vm998, %v951, 0
      %v1285 = vsel %vm998, %v952, 0
      %v1288 = vsel %vm998, %v953, 0
      %v1291 = vsel %vm998, %v954, 0
      %v1294 = vsel %vm998, %v955, 0
      %v1297 = vsel %vm998, %v956, 0
      %v1300 = vsel %vm998, %v957, 0
      %v1303 = vsel %vm998, %v958, 0
      %v1306 = vsel %vm998, %v959, 0
      %v1309 = vsel %vm998, %v960, 0
      %v1312 = vsel %vm998, %v961, 0
      %v1315 = vsel %vm998, %v962, 0
      %v1318 = vsel %vm998, %v963, 0
      %v1321 = vsel %vm998, %v964, 0
      %v1324 = vsel %vm998, %v965, 0
      %v1327 = vsel %vm998, %v966, 0
      %v1330 = vsel %vm998, %v967, 0
      %v1333 = vsel %vm998, %v968, 0
      %vm1335 = vcmask 1044480
      %vm1336 = vcmask 1045504
      %v1337 = vsel %vm1335, 4294967295, 65535
      %v1338 = vsel %vm1336, %v1337, 0
      %v1340 = vand.u32 %v993, %v1338
      %1342 = vmatpush.bf16.msra.mxu0 0
      %1343 = vmatpush.bf16.msra.mxu0 0
      %1344 = vmatpush.bf16.msra.mxu0 0
      %1345 = vmatpush.bf16.msra.mxu0 %v1340
      %1346 = vmatpush.bf16.msra.mxu0 %v992
      %1347 = vmatpush.bf16.msra.mxu0 %v991
      %1348 = vmatpush.bf16.msra.mxu0 %v990
      %1349 = vmatpush.bf16.msra.mxu0 %v989
      %1350 = vmatmul.bf16.gmra.mxu0 %v1000
      %v1351 = vpop.f32.mrf.mxu0
      %v1352 = vadd.f32 0.0, %v1351
      %v1353 = vpop.f32.mrf.mxu0
      %v1354 = vadd.f32 0.0, %v1353
      %1355 = vmatmul.bf16.gmra.mxu0 %v1003
      %v1356 = vpop.f32.mrf.mxu0
      %v1357 = vadd.f32 0.0, %v1356
      %v1358 = vpop.f32.mrf.mxu0
      %v1359 = vadd.f32 0.0, %v1358
      %1360 = vmatmul.bf16.gmra.mxu0 %v1006
      %v1361 = vpop.f32.mrf.mxu0
      %v1362 = vadd.f32 0.0, %v1361
      %v1363 = vpop.f32.mrf.mxu0
      %v1364 = vadd.f32 0.0, %v1363
      %1365 = vmatmul.bf16.gmra.mxu0 %v1009
      %v1366 = vpop.f32.mrf.mxu0
      %v1367 = vadd.f32 0.0, %v1366
      %v1368 = vpop.f32.mrf.mxu0
      %v1369 = vadd.f32 0.0, %v1368
      %1370 = vmatmul.bf16.gmra.mxu0 %v1012
      %v1371 = vpop.f32.mrf.mxu0
      %v1372 = vadd.f32 0.0, %v1371
      %v1373 = vpop.f32.mrf.mxu0
      %v1374 = vadd.f32 0.0, %v1373
      %1375 = vmatmul.bf16.gmra.mxu0 %v1015
      %v1376 = vpop.f32.mrf.mxu0
      %v1377 = vadd.f32 0.0, %v1376
      %v1378 = vpop.f32.mrf.mxu0
      %v1379 = vadd.f32 0.0, %v1378
      %1380 = vmatmul.bf16.gmra.mxu0 %v1018
      %v1381 = vpop.f32.mrf.mxu0
      %v1382 = vadd.f32 0.0, %v1381
      %v1383 = vpop.f32.mrf.mxu0
      %v1384 = vadd.f32 0.0, %v1383
      %1385 = vmatmul.bf16.gmra.mxu0 %v1021
      %v1386 = vpop.f32.mrf.mxu0
      %v1387 = vadd.f32 0.0, %v1386
      %v1388 = vpop.f32.mrf.mxu0
      %v1389 = vadd.f32 0.0, %v1388
      %1390 = vmatmul.bf16.gmra.mxu0 %v1024
      %v1391 = vpop.f32.mrf.mxu0
      %v1392 = vadd.f32 0.0, %v1391
      %v1393 = vpop.f32.mrf.mxu0
      %v1394 = vadd.f32 0.0, %v1393
      %1395 = vmatmul.bf16.gmra.mxu0 %v1027
      %v1396 = vpop.f32.mrf.mxu0
      %v1397 = vadd.f32 0.0, %v1396
      %v1398 = vpop.f32.mrf.mxu0
      %v1399 = vadd.f32 0.0, %v1398
      %1400 = vmatmul.bf16.gmra.mxu0 %v1030
      %v1401 = vpop.f32.mrf.mxu0
      %v1402 = vadd.f32 0.0, %v1401
      %v1403 = vpop.f32.mrf.mxu0
      %v1404 = vadd.f32 0.0, %v1403
      %1405 = vmatmul.bf16.gmra.mxu0 %v1033
      %v1406 = vpop.f32.mrf.mxu0
      %v1407 = vadd.f32 0.0, %v1406
      %v1408 = vpop.f32.mrf.mxu0
      %v1409 = vadd.f32 0.0, %v1408
      %1410 = vmatmul.bf16.gmra.mxu0 %v1036
      %v1411 = vpop.f32.mrf.mxu0
      %v1412 = vadd.f32 0.0, %v1411
      %v1413 = vpop.f32.mrf.mxu0
      %v1414 = vadd.f32 0.0, %v1413
      %1415 = vmatmul.bf16.gmra.mxu0 %v1039
      %v1416 = vpop.f32.mrf.mxu0
      %v1417 = vadd.f32 0.0, %v1416
      %v1418 = vpop.f32.mrf.mxu0
      %v1419 = vadd.f32 0.0, %v1418
      %1420 = vmatmul.bf16.gmra.mxu0 %v1042
      %v1421 = vpop.f32.mrf.mxu0
      %v1422 = vadd.f32 0.0, %v1421
      %v1423 = vpop.f32.mrf.mxu0
      %v1424 = vadd.f32 0.0, %v1423
      %1425 = vmatmul.bf16.gmra.mxu0 %v1045
      %v1426 = vpop.f32.mrf.mxu0
      %v1427 = vadd.f32 0.0, %v1426
      %v1428 = vpop.f32.mrf.mxu0
      %v1429 = vadd.f32 0.0, %v1428
      %1430 = vmatmul.bf16.gmra.mxu0 %v1048
      %v1431 = vpop.f32.mrf.mxu0
      %v1432 = vadd.f32 0.0, %v1431
      %v1433 = vpop.f32.mrf.mxu0
      %v1434 = vadd.f32 0.0, %v1433
      %1435 = vmatmul.bf16.gmra.mxu0 %v1051
      %v1436 = vpop.f32.mrf.mxu0
      %v1437 = vadd.f32 0.0, %v1436
      %v1438 = vpop.f32.mrf.mxu0
      %v1439 = vadd.f32 0.0, %v1438
      %1440 = vmatmul.bf16.gmra.mxu0 %v1054
      %v1441 = vpop.f32.mrf.mxu0
      %v1442 = vadd.f32 0.0, %v1441
      %v1443 = vpop.f32.mrf.mxu0
      %v1444 = vadd.f32 0.0, %v1443
      %1445 = vmatmul.bf16.gmra.mxu0 %v1057
      %v1446 = vpop.f32.mrf.mxu0
      %v1447 = vadd.f32 0.0, %v1446
      %v1448 = vpop.f32.mrf.mxu0
      %v1449 = vadd.f32 0.0, %v1448
      %1450 = vmatmul.bf16.gmra.mxu0 %v1060
      %v1451 = vpop.f32.mrf.mxu0
      %v1452 = vadd.f32 0.0, %v1451
      %v1453 = vpop.f32.mrf.mxu0
      %v1454 = vadd.f32 0.0, %v1453
      %1455 = vmatmul.bf16.gmra.mxu0 %v1063
      %v1456 = vpop.f32.mrf.mxu0
      %v1457 = vadd.f32 0.0, %v1456
      %v1458 = vpop.f32.mrf.mxu0
      %v1459 = vadd.f32 0.0, %v1458
      %1460 = vmatmul.bf16.gmra.mxu0 %v1066
      %v1461 = vpop.f32.mrf.mxu0
      %v1462 = vadd.f32 0.0, %v1461
      %v1463 = vpop.f32.mrf.mxu0
      %v1464 = vadd.f32 0.0, %v1463
      %1465 = vmatmul.bf16.gmra.mxu0 %v1069
      %v1466 = vpop.f32.mrf.mxu0
      %v1467 = vadd.f32 0.0, %v1466
      %v1468 = vpop.f32.mrf.mxu0
      %v1469 = vadd.f32 0.0, %v1468
      %1470 = vmatmul.bf16.gmra.mxu0 %v1072
      %v1471 = vpop.f32.mrf.mxu0
      %v1472 = vadd.f32 0.0, %v1471
      %v1473 = vpop.f32.mrf.mxu0
      %v1474 = vadd.f32 0.0, %v1473
      %1475 = vmatmul.bf16.gmra.mxu0 %v1075
      %v1476 = vpop.f32.mrf.mxu0
      %v1477 = vadd.f32 0.0, %v1476
      %v1478 = vpop.f32.mrf.mxu0
      %v1479 = vadd.f32 0.0, %v1478
      %1480 = vmatmul.bf16.gmra.mxu0 %v1078
      %v1481 = vpop.f32.mrf.mxu0
      %v1482 = vadd.f32 0.0, %v1481
      %v1483 = vpop.f32.mrf.mxu0
      %v1484 = vadd.f32 0.0, %v1483
      %1485 = vmatmul.bf16.gmra.mxu0 %v1081
      %v1486 = vpop.f32.mrf.mxu0
      %v1487 = vadd.f32 0.0, %v1486
      %v1488 = vpop.f32.mrf.mxu0
      %v1489 = vadd.f32 0.0, %v1488
      %1490 = vmatmul.bf16.gmra.mxu0 %v1084
      %v1491 = vpop.f32.mrf.mxu0
      %v1492 = vadd.f32 0.0, %v1491
      %v1493 = vpop.f32.mrf.mxu0
      %v1494 = vadd.f32 0.0, %v1493
      %1495 = vmatmul.bf16.gmra.mxu0 %v1087
      %v1496 = vpop.f32.mrf.mxu0
      %v1497 = vadd.f32 0.0, %v1496
      %v1498 = vpop.f32.mrf.mxu0
      %v1499 = vadd.f32 0.0, %v1498
      %1500 = vmatmul.bf16.gmra.mxu0 %v1090
      %v1501 = vpop.f32.mrf.mxu0
      %v1502 = vadd.f32 0.0, %v1501
      %v1503 = vpop.f32.mrf.mxu0
      %v1504 = vadd.f32 0.0, %v1503
      %1505 = vmatmul.bf16.gmra.mxu0 %v1093
      %v1506 = vpop.f32.mrf.mxu0
      %v1507 = vadd.f32 0.0, %v1506
      %v1508 = vpop.f32.mrf.mxu0
      %v1509 = vadd.f32 0.0, %v1508
      %1510 = vmatmul.bf16.gmra.mxu0 %v1096
      %v1511 = vpop.f32.mrf.mxu0
      %v1512 = vadd.f32 0.0, %v1511
      %v1513 = vpop.f32.mrf.mxu0
      %v1514 = vadd.f32 0.0, %v1513
      %1515 = vmatmul.bf16.gmra.mxu0 %v1099
      %v1516 = vpop.f32.mrf.mxu0
      %v1517 = vadd.f32 0.0, %v1516
      %v1518 = vpop.f32.mrf.mxu0
      %v1519 = vadd.f32 0.0, %v1518
      %1520 = vmatmul.bf16.gmra.mxu0 %v1102
      %v1521 = vpop.f32.mrf.mxu0
      %v1522 = vadd.f32 0.0, %v1521
      %v1523 = vpop.f32.mrf.mxu0
      %v1524 = vadd.f32 0.0, %v1523
      %1525 = vmatmul.bf16.gmra.mxu0 %v1105
      %v1526 = vpop.f32.mrf.mxu0
      %v1527 = vadd.f32 0.0, %v1526
      %v1528 = vpop.f32.mrf.mxu0
      %v1529 = vadd.f32 0.0, %v1528
      %1530 = vmatmul.bf16.gmra.mxu0 %v1108
      %v1531 = vpop.f32.mrf.mxu0
      %v1532 = vadd.f32 0.0, %v1531
      %v1533 = vpop.f32.mrf.mxu0
      %v1534 = vadd.f32 0.0, %v1533
      %1535 = vmatmul.bf16.gmra.mxu0 %v1111
      %v1536 = vpop.f32.mrf.mxu0
      %v1537 = vadd.f32 0.0, %v1536
      %v1538 = vpop.f32.mrf.mxu0
      %v1539 = vadd.f32 0.0, %v1538
      %1540 = vmatmul.bf16.gmra.mxu0 %v1114
      %v1541 = vpop.f32.mrf.mxu0
      %v1542 = vadd.f32 0.0, %v1541
      %v1543 = vpop.f32.mrf.mxu0
      %v1544 = vadd.f32 0.0, %v1543
      %1545 = vmatmul.bf16.gmra.mxu0 %v1117
      %v1546 = vpop.f32.mrf.mxu0
      %v1547 = vadd.f32 0.0, %v1546
      %v1548 = vpop.f32.mrf.mxu0
      %v1549 = vadd.f32 0.0, %v1548
      %1550 = vmatmul.bf16.gmra.mxu0 %v1120
      %v1551 = vpop.f32.mrf.mxu0
      %v1552 = vadd.f32 0.0, %v1551
      %v1553 = vpop.f32.mrf.mxu0
      %v1554 = vadd.f32 0.0, %v1553
      %1555 = vmatmul.bf16.gmra.mxu0 %v1123
      %v1556 = vpop.f32.mrf.mxu0
      %v1557 = vadd.f32 0.0, %v1556
      %v1558 = vpop.f32.mrf.mxu0
      %v1559 = vadd.f32 0.0, %v1558
      %1560 = vmatmul.bf16.gmra.mxu0 %v1126
      %v1561 = vpop.f32.mrf.mxu0
      %v1562 = vadd.f32 0.0, %v1561
      %v1563 = vpop.f32.mrf.mxu0
      %v1564 = vadd.f32 0.0, %v1563
      %1565 = vmatmul.bf16.gmra.mxu0 %v1129
      %v1566 = vpop.f32.mrf.mxu0
      %v1567 = vadd.f32 0.0, %v1566
      %v1568 = vpop.f32.mrf.mxu0
      %v1569 = vadd.f32 0.0, %v1568
      %1570 = vmatmul.bf16.gmra.mxu0 %v1132
      %v1571 = vpop.f32.mrf.mxu0
      %v1572 = vadd.f32 0.0, %v1571
      %v1573 = vpop.f32.mrf.mxu0
      %v1574 = vadd.f32 0.0, %v1573
      %1575 = vmatmul.bf16.gmra.mxu0 %v1135
      %v1576 = vpop.f32.mrf.mxu0
      %v1577 = vadd.f32 0.0, %v1576
      %v1578 = vpop.f32.mrf.mxu0
      %v1579 = vadd.f32 0.0, %v1578
      %1580 = vmatmul.bf16.gmra.mxu0 %v1138
      %v1581 = vpop.f32.mrf.mxu0
      %v1582 = vadd.f32 0.0, %v1581
      %v1583 = vpop.f32.mrf.mxu0
      %v1584 = vadd.f32 0.0, %v1583
      %1585 = vmatmul.bf16.gmra.mxu0 %v1141
      %v1586 = vpop.f32.mrf.mxu0
      %v1587 = vadd.f32 0.0, %v1586
      %v1588 = vpop.f32.mrf.mxu0
      %v1589 = vadd.f32 0.0, %v1588
      %1590 = vmatmul.bf16.gmra.mxu0 %v1144
      %v1591 = vpop.f32.mrf.mxu0
      %v1592 = vadd.f32 0.0, %v1591
      %v1593 = vpop.f32.mrf.mxu0
      %v1594 = vadd.f32 0.0, %v1593
      %1595 = vmatmul.bf16.gmra.mxu0 %v1147
      %v1596 = vpop.f32.mrf.mxu0
      %v1597 = vadd.f32 0.0, %v1596
      %v1598 = vpop.f32.mrf.mxu0
      %v1599 = vadd.f32 0.0, %v1598
      %1600 = vmatmul.bf16.gmra.mxu0 %v1150
      %v1601 = vpop.f32.mrf.mxu0
      %v1602 = vadd.f32 0.0, %v1601
      %v1603 = vpop.f32.mrf.mxu0
      %v1604 = vadd.f32 0.0, %v1603
      %1605 = vmatmul.bf16.gmra.mxu0 %v1153
      %v1606 = vpop.f32.mrf.mxu0
      %v1607 = vadd.f32 0.0, %v1606
      %v1608 = vpop.f32.mrf.mxu0
      %v1609 = vadd.f32 0.0, %v1608
      %1610 = vmatmul.bf16.gmra.mxu0 %v1156
      %v1611 = vpop.f32.mrf.mxu0
      %v1612 = vadd.f32 0.0, %v1611
      %v1613 = vpop.f32.mrf.mxu0
      %v1614 = vadd.f32 0.0, %v1613
      %1615 = vmatmul.bf16.gmra.mxu0 %v1159
      %v1616 = vpop.f32.mrf.mxu0
      %v1617 = vadd.f32 0.0, %v1616
      %v1618 = vpop.f32.mrf.mxu0
      %v1619 = vadd.f32 0.0, %v1618
      %1620 = vmatmul.bf16.gmra.mxu0 %v1162
      %v1621 = vpop.f32.mrf.mxu0
      %v1622 = vadd.f32 0.0, %v1621
      %v1623 = vpop.f32.mrf.mxu0
      %v1624 = vadd.f32 0.0, %v1623
      %1625 = vmatmul.bf16.gmra.mxu0 %v1165
      %v1626 = vpop.f32.mrf.mxu0
      %v1627 = vadd.f32 0.0, %v1626
      %v1628 = vpop.f32.mrf.mxu0
      %v1629 = vadd.f32 0.0, %v1628
      %1630 = vmatmul.bf16.gmra.mxu0 %v1168
      %v1631 = vpop.f32.mrf.mxu0
      %v1632 = vadd.f32 0.0, %v1631
      %v1633 = vpop.f32.mrf.mxu0
      %v1634 = vadd.f32 0.0, %v1633
      %1635 = vmatmul.bf16.gmra.mxu0 %v1171
      %v1636 = vpop.f32.mrf.mxu0
      %v1637 = vadd.f32 0.0, %v1636
      %v1638 = vpop.f32.mrf.mxu0
      %v1639 = vadd.f32 0.0, %v1638
      %1640 = vmatmul.bf16.gmra.mxu0 %v1174
      %v1641 = vpop.f32.mrf.mxu0
      %v1642 = vadd.f32 0.0, %v1641
      %v1643 = vpop.f32.mrf.mxu0
      %v1644 = vadd.f32 0.0, %v1643
      %1645 = vmatmul.bf16.gmra.mxu0 %v1177
      %v1646 = vpop.f32.mrf.mxu0
      %v1647 = vadd.f32 0.0, %v1646
      %v1648 = vpop.f32.mrf.mxu0
      %v1649 = vadd.f32 0.0, %v1648
      %1650 = vmatmul.bf16.gmra.mxu0 %v1180
      %v1651 = vpop.f32.mrf.mxu0
      %v1652 = vadd.f32 0.0, %v1651
      %v1653 = vpop.f32.mrf.mxu0
      %v1654 = vadd.f32 0.0, %v1653
      %1655 = vmatmul.bf16.gmra.mxu0 %v1183
      %v1656 = vpop.f32.mrf.mxu0
      %v1657 = vadd.f32 0.0, %v1656
      %v1658 = vpop.f32.mrf.mxu0
      %v1659 = vadd.f32 0.0, %v1658
      %1660 = vmatmul.bf16.gmra.mxu0 %v1186
      %v1661 = vpop.f32.mrf.mxu0
      %v1662 = vadd.f32 0.0, %v1661
      %v1663 = vpop.f32.mrf.mxu0
      %v1664 = vadd.f32 0.0, %v1663
      %1665 = vmatmul.bf16.gmra.mxu0 %v1189
      %v1666 = vpop.f32.mrf.mxu0
      %v1667 = vadd.f32 0.0, %v1666
      %v1668 = vpop.f32.mrf.mxu0
      %v1669 = vadd.f32 0.0, %v1668
      %1670 = vmatmul.bf16.gmra.mxu0 %v1192
      %v1671 = vpop.f32.mrf.mxu0
      %v1672 = vadd.f32 0.0, %v1671
      %v1673 = vpop.f32.mrf.mxu0
      %v1674 = vadd.f32 0.0, %v1673
      %1675 = vmatmul.bf16.gmra.mxu0 %v1195
      %v1676 = vpop.f32.mrf.mxu0
      %v1677 = vadd.f32 0.0, %v1676
      %v1678 = vpop.f32.mrf.mxu0
      %v1679 = vadd.f32 0.0, %v1678
      %1680 = vmatmul.bf16.gmra.mxu0 %v1198
      %v1681 = vpop.f32.mrf.mxu0
      %v1682 = vadd.f32 0.0, %v1681
      %v1683 = vpop.f32.mrf.mxu0
      %v1684 = vadd.f32 0.0, %v1683
      %1685 = vmatmul.bf16.gmra.mxu0 %v1201
      %v1686 = vpop.f32.mrf.mxu0
      %v1687 = vadd.f32 0.0, %v1686
      %v1688 = vpop.f32.mrf.mxu0
      %v1689 = vadd.f32 0.0, %v1688
      %1690 = vmatmul.bf16.gmra.mxu0 %v1204
      %v1691 = vpop.f32.mrf.mxu0
      %v1692 = vadd.f32 0.0, %v1691
      %v1693 = vpop.f32.mrf.mxu0
      %v1694 = vadd.f32 0.0, %v1693
      %1695 = vmatmul.bf16.gmra.mxu0 %v1207
      %v1696 = vpop.f32.mrf.mxu0
      %v1697 = vadd.f32 0.0, %v1696
      %v1698 = vpop.f32.mrf.mxu0
      %v1699 = vadd.f32 0.0, %v1698
      %1700 = vmatmul.bf16.gmra.mxu0 %v1210
      %v1701 = vpop.f32.mrf.mxu0
      %v1702 = vadd.f32 0.0, %v1701
      %v1703 = vpop.f32.mrf.mxu0
      %v1704 = vadd.f32 0.0, %v1703
      %1705 = vmatmul.bf16.gmra.mxu0 %v1213
      %v1706 = vpop.f32.mrf.mxu0
      %v1707 = vadd.f32 0.0, %v1706
      %v1708 = vpop.f32.mrf.mxu0
      %v1709 = vadd.f32 0.0, %v1708
      %1710 = vmatmul.bf16.gmra.mxu0 %v1216
      %v1711 = vpop.f32.mrf.mxu0
      %v1712 = vadd.f32 0.0, %v1711
      %v1713 = vpop.f32.mrf.mxu0
      %v1714 = vadd.f32 0.0, %v1713
      %1715 = vmatmul.bf16.gmra.mxu0 %v1219
      %v1716 = vpop.f32.mrf.mxu0
      %v1717 = vadd.f32 0.0, %v1716
      %v1718 = vpop.f32.mrf.mxu0
      %v1719 = vadd.f32 0.0, %v1718
      %1720 = vmatmul.bf16.gmra.mxu0 %v1222
      %v1721 = vpop.f32.mrf.mxu0
      %v1722 = vadd.f32 0.0, %v1721
      %v1723 = vpop.f32.mrf.mxu0
      %v1724 = vadd.f32 0.0, %v1723
      %1725 = vmatmul.bf16.gmra.mxu0 %v1225
      %v1726 = vpop.f32.mrf.mxu0
      %v1727 = vadd.f32 0.0, %v1726
      %v1728 = vpop.f32.mrf.mxu0
      %v1729 = vadd.f32 0.0, %v1728
      %1730 = vmatmul.bf16.gmra.mxu0 %v1228
      %v1731 = vpop.f32.mrf.mxu0
      %v1732 = vadd.f32 0.0, %v1731
      %v1733 = vpop.f32.mrf.mxu0
      %v1734 = vadd.f32 0.0, %v1733
      %1735 = vmatmul.bf16.gmra.mxu0 %v1231
      %v1736 = vpop.f32.mrf.mxu0
      %v1737 = vadd.f32 0.0, %v1736
      %v1738 = vpop.f32.mrf.mxu0
      %v1739 = vadd.f32 0.0, %v1738
      %1740 = vmatmul.bf16.gmra.mxu0 %v1234
      %v1741 = vpop.f32.mrf.mxu0
      %v1742 = vadd.f32 0.0, %v1741
      %v1743 = vpop.f32.mrf.mxu0
      %v1744 = vadd.f32 0.0, %v1743
      %1745 = vmatmul.bf16.gmra.mxu0 %v1237
      %v1746 = vpop.f32.mrf.mxu0
      %v1747 = vadd.f32 0.0, %v1746
      %v1748 = vpop.f32.mrf.mxu0
      %v1749 = vadd.f32 0.0, %v1748
      %1750 = vmatmul.bf16.gmra.mxu0 %v1240
      %v1751 = vpop.f32.mrf.mxu0
      %v1752 = vadd.f32 0.0, %v1751
      %v1753 = vpop.f32.mrf.mxu0
      %v1754 = vadd.f32 0.0, %v1753
      %1755 = vmatmul.bf16.gmra.mxu0 %v1243
      %v1756 = vpop.f32.mrf.mxu0
      %v1757 = vadd.f32 0.0, %v1756
      %v1758 = vpop.f32.mrf.mxu0
      %v1759 = vadd.f32 0.0, %v1758
      %1760 = vmatmul.bf16.gmra.mxu0 %v1246
      %v1761 = vpop.f32.mrf.mxu0
      %v1762 = vadd.f32 0.0, %v1761
      %v1763 = vpop.f32.mrf.mxu0
      %v1764 = vadd.f32 0.0, %v1763
      %1765 = vmatmul.bf16.gmra.mxu0 %v1249
      %v1766 = vpop.f32.mrf.mxu0
      %v1767 = vadd.f32 0.0, %v1766
      %v1768 = vpop.f32.mrf.mxu0
      %v1769 = vadd.f32 0.0, %v1768
      %1770 = vmatmul.bf16.gmra.mxu0 %v1252
      %v1771 = vpop.f32.mrf.mxu0
      %v1772 = vadd.f32 0.0, %v1771
      %v1773 = vpop.f32.mrf.mxu0
      %v1774 = vadd.f32 0.0, %v1773
      %1775 = vmatmul.bf16.gmra.mxu0 %v1255
      %v1776 = vpop.f32.mrf.mxu0
      %v1777 = vadd.f32 0.0, %v1776
      %v1778 = vpop.f32.mrf.mxu0
      %v1779 = vadd.f32 0.0, %v1778
      %1780 = vmatmul.bf16.gmra.mxu0 %v1258
      %v1781 = vpop.f32.mrf.mxu0
      %v1782 = vadd.f32 0.0, %v1781
      %v1783 = vpop.f32.mrf.mxu0
      %v1784 = vadd.f32 0.0, %v1783
      %1785 = vmatmul.bf16.gmra.mxu0 %v1261
      %v1786 = vpop.f32.mrf.mxu0
      %v1787 = vadd.f32 0.0, %v1786
      %v1788 = vpop.f32.mrf.mxu0
      %v1789 = vadd.f32 0.0, %v1788
      %1790 = vmatmul.bf16.gmra.mxu0 %v1264
      %v1791 = vpop.f32.mrf.mxu0
      %v1792 = vadd.f32 0.0, %v1791
      %v1793 = vpop.f32.mrf.mxu0
      %v1794 = vadd.f32 0.0, %v1793
      %1795 = vmatmul.bf16.gmra.mxu0 %v1267
      %v1796 = vpop.f32.mrf.mxu0
      %v1797 = vadd.f32 0.0, %v1796
      %v1798 = vpop.f32.mrf.mxu0
      %v1799 = vadd.f32 0.0, %v1798
      %1800 = vmatmul.bf16.gmra.mxu0 %v1270
      %v1801 = vpop.f32.mrf.mxu0
      %v1802 = vadd.f32 0.0, %v1801
      %v1803 = vpop.f32.mrf.mxu0
      %v1804 = vadd.f32 0.0, %v1803
      %1805 = vmatmul.bf16.gmra.mxu0 %v1273
      %v1806 = vpop.f32.mrf.mxu0
      %v1807 = vadd.f32 0.0, %v1806
      %v1808 = vpop.f32.mrf.mxu0
      %v1809 = vadd.f32 0.0, %v1808
      %1810 = vmatmul.bf16.gmra.mxu0 %v1276
      %v1811 = vpop.f32.mrf.mxu0
      %v1812 = vadd.f32 0.0, %v1811
      %v1813 = vpop.f32.mrf.mxu0
      %v1814 = vadd.f32 0.0, %v1813
      %1815 = vmatmul.bf16.gmra.mxu0 %v1279
      %v1816 = vpop.f32.mrf.mxu0
      %v1817 = vadd.f32 0.0, %v1816
      %v1818 = vpop.f32.mrf.mxu0
      %v1819 = vadd.f32 0.0, %v1818
      %1820 = vmatmul.bf16.gmra.mxu0 %v1282
      %v1821 = vpop.f32.mrf.mxu0
      %v1822 = vadd.f32 0.0, %v1821
      %v1823 = vpop.f32.mrf.mxu0
      %v1824 = vadd.f32 0.0, %v1823
      %1825 = vmatmul.bf16.gmra.mxu0 %v1285
      %v1826 = vpop.f32.mrf.mxu0
      %v1827 = vadd.f32 0.0, %v1826
      %v1828 = vpop.f32.mrf.mxu0
      %v1829 = vadd.f32 0.0, %v1828
      %1830 = vmatmul.bf16.gmra.mxu0 %v1288
      %v1831 = vpop.f32.mrf.mxu0
      %v1832 = vadd.f32 0.0, %v1831
      %v1833 = vpop.f32.mrf.mxu0
      %v1834 = vadd.f32 0.0, %v1833
      %1835 = vmatmul.bf16.gmra.mxu0 %v1291
      %v1836 = vpop.f32.mrf.mxu0
      %v1837 = vadd.f32 0.0, %v1836
      %v1838 = vpop.f32.mrf.mxu0
      %v1839 = vadd.f32 0.0, %v1838
      %1840 = vmatmul.bf16.gmra.mxu0 %v1294
      %v1841 = vpop.f32.mrf.mxu0
      %v1842 = vadd.f32 0.0, %v1841
      %v1843 = vpop.f32.mrf.mxu0
      %v1844 = vadd.f32 0.0, %v1843
      %1845 = vmatmul.bf16.gmra.mxu0 %v1297
      %v1846 = vpop.f32.mrf.mxu0
      %v1847 = vadd.f32 0.0, %v1846
      %v1848 = vpop.f32.mrf.mxu0
      %v1849 = vadd.f32 0.0, %v1848
      %1850 = vmatmul.bf16.gmra.mxu0 %v1300
      %v1851 = vpop.f32.mrf.mxu0
      %v1852 = vadd.f32 0.0, %v1851
      %v1853 = vpop.f32.mrf.mxu0
      %v1854 = vadd.f32 0.0, %v1853
      %1855 = vmatmul.bf16.gmra.mxu0 %v1303
      %v1856 = vpop.f32.mrf.mxu0
      %v1857 = vadd.f32 0.0, %v1856
      %v1858 = vpop.f32.mrf.mxu0
      %v1859 = vadd.f32 0.0, %v1858
      %1860 = vmatmul.bf16.gmra.mxu0 %v1306
      %v1861 = vpop.f32.mrf.mxu0
      %v1862 = vadd.f32 0.0, %v1861
      %v1863 = vpop.f32.mrf.mxu0
      %v1864 = vadd.f32 0.0, %v1863
      %1865 = vmatmul.bf16.gmra.mxu0 %v1309
      %v1866 = vpop.f32.mrf.mxu0
      %v1867 = vadd.f32 0.0, %v1866
      %v1868 = vpop.f32.mrf.mxu0
      %v1869 = vadd.f32 0.0, %v1868
      %1870 = vmatmul.bf16.gmra.mxu0 %v1312
      %v1871 = vpop.f32.mrf.mxu0
      %v1872 = vadd.f32 0.0, %v1871
      %v1873 = vpop.f32.mrf.mxu0
      %v1874 = vadd.f32 0.0, %v1873
      %1875 = vmatmul.bf16.gmra.mxu0 %v1315
      %v1876 = vpop.f32.mrf.mxu0
      %v1877 = vadd.f32 0.0, %v1876
      %v1878 = vpop.f32.mrf.mxu0
      %v1879 = vadd.f32 0.0, %v1878
      %1880 = vmatmul.bf16.gmra.mxu0 %v1318
      %v1881 = vpop.f32.mrf.mxu0
      %v1882 = vadd.f32 0.0, %v1881
      %v1883 = vpop.f32.mrf.mxu0
      %v1884 = vadd.f32 0.0, %v1883
      %1885 = vmatmul.bf16.gmra.mxu0 %v1321
      %v1886 = vpop.f32.mrf.mxu0
      %v1887 = vadd.f32 0.0, %v1886
      %v1888 = vpop.f32.mrf.mxu0
      %v1889 = vadd.f32 0.0, %v1888
      %1890 = vmatmul.bf16.gmra.mxu0 %v1324
      %v1891 = vpop.f32.mrf.mxu0
      %v1892 = vadd.f32 0.0, %v1891
      %v1893 = vpop.f32.mrf.mxu0
      %v1894 = vadd.f32 0.0, %v1893
      %1895 = vmatmul.bf16.gmra.mxu0 %v1327
      %v1896 = vpop.f32.mrf.mxu0
      %v1897 = vadd.f32 0.0, %v1896
      %v1898 = vpop.f32.mrf.mxu0
      %v1899 = vadd.f32 0.0, %v1898
      %1900 = vmatmul.bf16.gmra.mxu0 %v1330
      %v1901 = vpop.f32.mrf.mxu0
      %v1902 = vadd.f32 0.0, %v1901
      %v1903 = vpop.f32.mrf.mxu0
      %v1904 = vadd.f32 0.0, %v1903
      %1905 = vmatmul.bf16.gmra.mxu0 %v1333
      %v1906 = vpop.f32.mrf.mxu0
      %v1907 = vadd.f32 0.0, %v1906
      %v1908 = vpop.f32.mrf.mxu0
      %v1909 = vadd.f32 0.0, %v1908
      %1910 = vdwg.mxu0
      %v1911 = vmax.f32 %v1352, %v1492
      %v1912 = vmax.f32 %v1354, %v1494
      %v1913 = vmax.f32 %v1357, %v1497
      %v1914 = vmax.f32 %v1359, %v1499
      %v1915 = vmax.f32 %v1362, %v1502
      %v1916 = vmax.f32 %v1364, %v1504
      %v1917 = vmax.f32 %v1367, %v1507
      %v1918 = vmax.f32 %v1369, %v1509
      %v1919 = vmax.f32 %v1372, %v1512
      %v1920 = vmax.f32 %v1374, %v1514
      %v1921 = vmax.f32 %v1377, %v1517
      %v1922 = vmax.f32 %v1379, %v1519
      %v1923 = vmax.f32 %v1382, %v1522
      %v1924 = vmax.f32 %v1384, %v1524
      %v1925 = vmax.f32 %v1387, %v1527
      %v1926 = vmax.f32 %v1389, %v1529
      %v1927 = vmax.f32 %v1392, %v1532
      %v1928 = vmax.f32 %v1394, %v1534
      %v1929 = vmax.f32 %v1397, %v1537
      %v1930 = vmax.f32 %v1399, %v1539
      %v1931 = vmax.f32 %v1402, %v1542
      %v1932 = vmax.f32 %v1404, %v1544
      %v1933 = vmax.f32 %v1407, %v1547
      %v1934 = vmax.f32 %v1409, %v1549
      %v1935 = vmax.f32 %v1412, %v1552
      %v1936 = vmax.f32 %v1414, %v1554
      %v1937 = vmax.f32 %v1417, %v1557
      %v1938 = vmax.f32 %v1419, %v1559
      %v1939 = vmax.f32 %v1422, %v1562
      %v1940 = vmax.f32 %v1424, %v1564
      %v1941 = vmax.f32 %v1427, %v1567
      %v1942 = vmax.f32 %v1429, %v1569
      %v1943 = vmax.f32 %v1432, %v1572
      %v1944 = vmax.f32 %v1434, %v1574
      %v1945 = vmax.f32 %v1437, %v1577
      %v1946 = vmax.f32 %v1439, %v1579
      %v1947 = vmax.f32 %v1442, %v1582
      %v1948 = vmax.f32 %v1444, %v1584
      %v1949 = vmax.f32 %v1447, %v1587
      %v1950 = vmax.f32 %v1449, %v1589
      %v1951 = vmax.f32 %v1452, %v1592
      %v1952 = vmax.f32 %v1454, %v1594
      %v1953 = vmax.f32 %v1457, %v1597
      %v1954 = vmax.f32 %v1459, %v1599
      %v1955 = vmax.f32 %v1462, %v1602
      %v1956 = vmax.f32 %v1464, %v1604
      %v1957 = vmax.f32 %v1467, %v1607
      %v1958 = vmax.f32 %v1469, %v1609
      %v1959 = vmax.f32 %v1472, %v1612
      %v1960 = vmax.f32 %v1474, %v1614
      %v1961 = vmax.f32 %v1477, %v1617
      %v1962 = vmax.f32 %v1479, %v1619
      %v1963 = vmax.f32 %v1482, %v1622
      %v1964 = vmax.f32 %v1484, %v1624
      %v1965 = vmax.f32 %v1487, %v1627
      %v1966 = vmax.f32 %v1489, %v1629
      %v1967 = vmax.f32 %v1632, %v1772
      %v1968 = vmax.f32 %v1634, %v1774
      %v1969 = vmax.f32 %v1637, %v1777
      %v1970 = vmax.f32 %v1639, %v1779
      %v1971 = vmax.f32 %v1642, %v1782
      %v1972 = vmax.f32 %v1644, %v1784
      %v1973 = vmax.f32 %v1647, %v1787
      %v1974 = vmax.f32 %v1649, %v1789
      %v1975 = vmax.f32 %v1652, %v1792
      %v1976 = vmax.f32 %v1654, %v1794
      %v1977 = vmax.f32 %v1657, %v1797
      %v1978 = vmax.f32 %v1659, %v1799
      %v1979 = vmax.f32 %v1662, %v1802
      %v1980 = vmax.f32 %v1664, %v1804
      %v1981 = vmax.f32 %v1667, %v1807
      %v1982 = vmax.f32 %v1669, %v1809
      %v1983 = vmax.f32 %v1672, %v1812
      %v1984 = vmax.f32 %v1674, %v1814
      %v1985 = vmax.f32 %v1677, %v1817
      %v1986 = vmax.f32 %v1679, %v1819
      %v1987 = vmax.f32 %v1682, %v1822
      %v1988 = vmax.f32 %v1684, %v1824
      %v1989 = vmax.f32 %v1687, %v1827
      %v1990 = vmax.f32 %v1689, %v1829
      %v1991 = vmax.f32 %v1692, %v1832
      %v1992 = vmax.f32 %v1694, %v1834
      %v1993 = vmax.f32 %v1697, %v1837
      %v1994 = vmax.f32 %v1699, %v1839
      %v1995 = vmax.f32 %v1702, %v1842
      %v1996 = vmax.f32 %v1704, %v1844
      %v1997 = vmax.f32 %v1707, %v1847
      %v1998 = vmax.f32 %v1709, %v1849
      %v1999 = vmax.f32 %v1712, %v1852
      %v2000 = vmax.f32 %v1714, %v1854
      %v2001 = vmax.f32 %v1717, %v1857
      %v2002 = vmax.f32 %v1719, %v1859
      %v2003 = vmax.f32 %v1722, %v1862
      %v2004 = vmax.f32 %v1724, %v1864
      %v2005 = vmax.f32 %v1727, %v1867
      %v2006 = vmax.f32 %v1729, %v1869
      %v2007 = vmax.f32 %v1732, %v1872
      %v2008 = vmax.f32 %v1734, %v1874
      %v2009 = vmax.f32 %v1737, %v1877
      %v2010 = vmax.f32 %v1739, %v1879
      %v2011 = vmax.f32 %v1742, %v1882
      %v2012 = vmax.f32 %v1744, %v1884
      %v2013 = vmax.f32 %v1747, %v1887
      %v2014 = vmax.f32 %v1749, %v1889
      %v2015 = vmax.f32 %v1752, %v1892
      %v2016 = vmax.f32 %v1754, %v1894
      %v2017 = vmax.f32 %v1757, %v1897
      %v2018 = vmax.f32 %v1759, %v1899
      %v2019 = vmax.f32 %v1762, %v1902
      %v2020 = vmax.f32 %v1764, %v1904
      %v2021 = vmax.f32 %v1767, %v1907
      %v2022 = vmax.f32 %v1769, %v1909
      %v2023 = vmax.f32 %v1911, %v1967
      %v2024 = vmax.f32 %v1912, %v1968
      %v2025 = vmax.f32 %v1913, %v1969
      %v2026 = vmax.f32 %v1914, %v1970
      %v2027 = vmax.f32 %v1915, %v1971
      %v2028 = vmax.f32 %v1916, %v1972
      %v2029 = vmax.f32 %v1917, %v1973
      %v2030 = vmax.f32 %v1918, %v1974
      %v2031 = vmax.f32 %v1919, %v1975
      %v2032 = vmax.f32 %v1920, %v1976
      %v2033 = vmax.f32 %v1921, %v1977
      %v2034 = vmax.f32 %v1922, %v1978
      %v2035 = vmax.f32 %v1923, %v1979
      %v2036 = vmax.f32 %v1924, %v1980
      %v2037 = vmax.f32 %v1925, %v1981
      %v2038 = vmax.f32 %v1926, %v1982
      %v2039 = vmax.f32 %v1927, %v1983
      %v2040 = vmax.f32 %v1928, %v1984
      %v2041 = vmax.f32 %v1929, %v1985
      %v2042 = vmax.f32 %v1930, %v1986
      %v2043 = vmax.f32 %v1931, %v1987
      %v2044 = vmax.f32 %v1932, %v1988
      %v2045 = vmax.f32 %v1933, %v1989
      %v2046 = vmax.f32 %v1934, %v1990
      %v2047 = vmax.f32 %v1935, %v1991
      %v2048 = vmax.f32 %v1936, %v1992
      %v2049 = vmax.f32 %v1937, %v1993
      %v2050 = vmax.f32 %v1938, %v1994
      %v2051 = vmax.f32 %v1939, %v1995
      %v2052 = vmax.f32 %v1940, %v1996
      %v2053 = vmax.f32 %v1941, %v1997
      %v2054 = vmax.f32 %v1942, %v1998
      %v2055 = vmax.f32 %v1943, %v1999
      %v2056 = vmax.f32 %v1944, %v2000
      %v2057 = vmax.f32 %v1945, %v2001
      %v2058 = vmax.f32 %v1946, %v2002
      %v2059 = vmax.f32 %v1947, %v2003
      %v2060 = vmax.f32 %v1948, %v2004
      %v2061 = vmax.f32 %v1949, %v2005
      %v2062 = vmax.f32 %v1950, %v2006
      %v2063 = vmax.f32 %v1951, %v2007
      %v2064 = vmax.f32 %v1952, %v2008
      %v2065 = vmax.f32 %v1953, %v2009
      %v2066 = vmax.f32 %v1954, %v2010
      %v2067 = vmax.f32 %v1955, %v2011
      %v2068 = vmax.f32 %v1956, %v2012
      %v2069 = vmax.f32 %v1957, %v2013
      %v2070 = vmax.f32 %v1958, %v2014
      %v2071 = vmax.f32 %v1959, %v2015
      %v2072 = vmax.f32 %v1960, %v2016
      %v2073 = vmax.f32 %v1961, %v2017
      %v2074 = vmax.f32 %v1962, %v2018
      %v2075 = vmax.f32 %v1963, %v2019
      %v2076 = vmax.f32 %v1964, %v2020
      %v2077 = vmax.f32 %v1965, %v2021
      %v2078 = vmax.f32 %v1966, %v2022
      %v2079 = vld [vmem:[%s2] sm:$0x1]
      %v2081 = vperm.slane %v2079, 0
      %v2083 = vadd.f32 %v2023, %v2081
      %v2084 = vadd.f32 %v2024, %v2081
      %v2085 = vadd.f32 %v2025, %v2081
      %v2086 = vadd.f32 %v2026, %v2081
      %v2087 = vadd.f32 %v2027, %v2081
      %v2088 = vadd.f32 %v2028, %v2081
      %v2089 = vadd.f32 %v2029, %v2081
      %v2090 = vadd.f32 %v2030, %v2081
      %v2091 = vadd.f32 %v2031, %v2081
      %v2092 = vadd.f32 %v2032, %v2081
      %v2093 = vadd.f32 %v2033, %v2081
      %v2094 = vadd.f32 %v2034, %v2081
      %v2095 = vadd.f32 %v2035, %v2081
      %v2096 = vadd.f32 %v2036, %v2081
      %v2097 = vadd.f32 %v2037, %v2081
      %v2098 = vadd.f32 %v2038, %v2081
      %v2099 = vadd.f32 %v2039, %v2081
      %v2100 = vadd.f32 %v2040, %v2081
      %v2101 = vadd.f32 %v2041, %v2081
      %v2102 = vadd.f32 %v2042, %v2081
      %v2103 = vadd.f32 %v2043, %v2081
      %v2104 = vadd.f32 %v2044, %v2081
      %v2105 = vadd.f32 %v2045, %v2081
      %v2106 = vadd.f32 %v2046, %v2081
      %v2107 = vadd.f32 %v2047, %v2081
      %v2108 = vadd.f32 %v2048, %v2081
      %v2109 = vadd.f32 %v2049, %v2081
      %v2110 = vadd.f32 %v2050, %v2081
      %v2111 = vadd.f32 %v2051, %v2081
      %v2112 = vadd.f32 %v2052, %v2081
      %v2113 = vadd.f32 %v2053, %v2081
      %v2114 = vadd.f32 %v2054, %v2081
      %v2115 = vadd.f32 %v2055, %v2081
      %v2116 = vadd.f32 %v2056, %v2081
      %v2117 = vadd.f32 %v2057, %v2081
      %v2118 = vadd.f32 %v2058, %v2081
      %v2119 = vadd.f32 %v2059, %v2081
      %v2120 = vadd.f32 %v2060, %v2081
      %v2121 = vadd.f32 %v2061, %v2081
      %v2122 = vadd.f32 %v2062, %v2081
      %v2123 = vadd.f32 %v2063, %v2081
      %v2124 = vadd.f32 %v2064, %v2081
      %v2125 = vadd.f32 %v2065, %v2081
      %v2126 = vadd.f32 %v2066, %v2081
      %v2127 = vadd.f32 %v2067, %v2081
      %v2128 = vadd.f32 %v2068, %v2081
      %v2129 = vadd.f32 %v2069, %v2081
      %v2130 = vadd.f32 %v2070, %v2081
      %v2131 = vadd.f32 %v2071, %v2081
      %v2132 = vadd.f32 %v2072, %v2081
      %v2133 = vadd.f32 %v2073, %v2081
      %v2134 = vadd.f32 %v2074, %v2081
      %v2135 = vadd.f32 %v2075, %v2081
      %v2136 = vadd.f32 %v2076, %v2081
      %v2137 = vadd.f32 %v2077, %v2081
      %v2138 = vadd.f32 %v2078, %v2081
      %v2139 = vmax.f32 %v2083, 0.0
      %v2140 = vmax.f32 %v2084, 0.0
      %v2141 = vmax.f32 %v2085, 0.0
      %v2142 = vmax.f32 %v2086, 0.0
      %v2143 = vmax.f32 %v2087, 0.0
      %v2144 = vmax.f32 %v2088, 0.0
      %v2145 = vmax.f32 %v2089, 0.0
      %v2146 = vmax.f32 %v2090, 0.0
      %v2147 = vmax.f32 %v2091, 0.0
      %v2148 = vmax.f32 %v2092, 0.0
      %v2149 = vmax.f32 %v2093, 0.0
      %v2150 = vmax.f32 %v2094, 0.0
      %v2151 = vmax.f32 %v2095, 0.0
      %v2152 = vmax.f32 %v2096, 0.0
      %v2153 = vmax.f32 %v2097, 0.0
      %v2154 = vmax.f32 %v2098, 0.0
      %v2155 = vmax.f32 %v2099, 0.0
      %v2156 = vmax.f32 %v2100, 0.0
      %v2157 = vmax.f32 %v2101, 0.0
      %v2158 = vmax.f32 %v2102, 0.0
      %v2159 = vmax.f32 %v2103, 0.0
      %v2160 = vmax.f32 %v2104, 0.0
      %v2161 = vmax.f32 %v2105, 0.0
      %v2162 = vmax.f32 %v2106, 0.0
      %v2163 = vmax.f32 %v2107, 0.0
      %v2164 = vmax.f32 %v2108, 0.0
      %v2165 = vmax.f32 %v2109, 0.0
      %v2166 = vmax.f32 %v2110, 0.0
      %v2167 = vmax.f32 %v2111, 0.0
      %v2168 = vmax.f32 %v2112, 0.0
      %v2169 = vmax.f32 %v2113, 0.0
      %v2170 = vmax.f32 %v2114, 0.0
      %v2171 = vmax.f32 %v2115, 0.0
      %v2172 = vmax.f32 %v2116, 0.0
      %v2173 = vmax.f32 %v2117, 0.0
      %v2174 = vmax.f32 %v2118, 0.0
      %v2175 = vmax.f32 %v2119, 0.0
      %v2176 = vmax.f32 %v2120, 0.0
      %v2177 = vmax.f32 %v2121, 0.0
      %v2178 = vmax.f32 %v2122, 0.0
      %v2179 = vmax.f32 %v2123, 0.0
      %v2180 = vmax.f32 %v2124, 0.0
      %v2181 = vmax.f32 %v2125, 0.0
      %v2182 = vmax.f32 %v2126, 0.0
      %v2183 = vmax.f32 %v2127, 0.0
      %v2184 = vmax.f32 %v2128, 0.0
      %v2185 = vmax.f32 %v2129, 0.0
      %v2186 = vmax.f32 %v2130, 0.0
      %v2187 = vmax.f32 %v2131, 0.0
      %v2188 = vmax.f32 %v2132, 0.0
      %v2189 = vmax.f32 %v2133, 0.0
      %v2190 = vmax.f32 %v2134, 0.0
      %v2191 = vmax.f32 %v2135, 0.0
      %v2192 = vmax.f32 %v2136, 0.0
      %v2193 = vmax.f32 %v2137, 0.0
      %v2194 = vmax.f32 %v2138, 0.0
      %v2195 = vpack.c.bf16 %v2139, %v2139
      %v2196 = vpack.c.bf16 %v2140, %v2140
      %v2197 = vpack.c.bf16 %v2141, %v2141
      %v2198 = vpack.c.bf16 %v2142, %v2142
      %v2199 = vpack.c.bf16 %v2143, %v2143
      %v2200 = vpack.c.bf16 %v2144, %v2144
      %v2201 = vpack.c.bf16 %v2145, %v2145
      %v2202 = vpack.c.bf16 %v2146, %v2146
      %v2203 = vpack.c.bf16 %v2147, %v2147
      %v2204 = vpack.c.bf16 %v2148, %v2148
      %v2205 = vpack.c.bf16 %v2149, %v2149
      %v2206 = vpack.c.bf16 %v2150, %v2150
      %v2207 = vpack.c.bf16 %v2151, %v2151
      %v2208 = vpack.c.bf16 %v2152, %v2152
      %v2209 = vpack.c.bf16 %v2153, %v2153
      %v2210 = vpack.c.bf16 %v2154, %v2154
      %v2211 = vpack.c.bf16 %v2155, %v2155
      %v2212 = vpack.c.bf16 %v2156, %v2156
      %v2213 = vpack.c.bf16 %v2157, %v2157
      %v2214 = vpack.c.bf16 %v2158, %v2158
      %v2215 = vpack.c.bf16 %v2159, %v2159
      %v2216 = vpack.c.bf16 %v2160, %v2160
      %v2217 = vpack.c.bf16 %v2161, %v2161
      %v2218 = vpack.c.bf16 %v2162, %v2162
      %v2219 = vpack.c.bf16 %v2163, %v2163
      %v2220 = vpack.c.bf16 %v2164, %v2164
      %v2221 = vpack.c.bf16 %v2165, %v2165
      %v2222 = vpack.c.bf16 %v2166, %v2166
      %v2223 = vpack.c.bf16 %v2167, %v2167
      %v2224 = vpack.c.bf16 %v2168, %v2168
      %v2225 = vpack.c.bf16 %v2169, %v2169
      %v2226 = vpack.c.bf16 %v2170, %v2170
      %v2227 = vpack.c.bf16 %v2171, %v2171
      %v2228 = vpack.c.bf16 %v2172, %v2172
      %v2229 = vpack.c.bf16 %v2173, %v2173
      %v2230 = vpack.c.bf16 %v2174, %v2174
      %v2231 = vpack.c.bf16 %v2175, %v2175
      %v2232 = vpack.c.bf16 %v2176, %v2176
      %v2233 = vpack.c.bf16 %v2177, %v2177
      %v2234 = vpack.c.bf16 %v2178, %v2178
      %v2235 = vpack.c.bf16 %v2179, %v2179
      %v2236 = vpack.c.bf16 %v2180, %v2180
      %v2237 = vpack.c.bf16 %v2181, %v2181
      %v2238 = vpack.c.bf16 %v2182, %v2182
      %v2239 = vpack.c.bf16 %v2183, %v2183
      %v2240 = vpack.c.bf16 %v2184, %v2184
      %v2241 = vpack.c.bf16 %v2185, %v2185
      %v2242 = vpack.c.bf16 %v2186, %v2186
      %v2243 = vpack.c.bf16 %v2187, %v2187
      %v2244 = vpack.c.bf16 %v2188, %v2188
      %v2245 = vpack.c.bf16 %v2189, %v2189
      %v2246 = vpack.c.bf16 %v2190, %v2190
      %v2247 = vpack.c.bf16 %v2191, %v2191
      %v2248 = vpack.c.bf16 %v2192, %v2192
      %v2249 = vpack.c.bf16 %v2193, %v2193
      %v2250 = vpack.c.bf16 %v2194, %v2194
      %vm2251 = vcmask 44032
      %2252 = vst.msk [vmem:[%s172] sm:$0xf] %vm2251, %v2195
      %2253 = vst.msk [vmem:[%s172 + $0x4] sm:$0xf] %vm2251, %v2196
      %2254 = vst.msk [vmem:[%s172 + $0x8] sm:$0xf] %vm2251, %v2197
      %2255 = vst.msk [vmem:[%s172 + $0xc] sm:$0xf] %vm2251, %v2198
      %2256 = vst.msk [vmem:[%s172 + $0x10] sm:$0xf] %vm2251, %v2199
      %2257 = vst.msk [vmem:[%s172 + $0x14] sm:$0xf] %vm2251, %v2200
      %2258 = vst.msk [vmem:[%s172 + $0x18] sm:$0xf] %vm2251, %v2201
      %2259 = vst.msk [vmem:[%s172 + $0x1c] sm:$0xf] %vm2251, %v2202
      %2260 = vst.msk [vmem:[%s172 + $0x20] sm:$0xf] %vm2251, %v2203
      %2261 = vst.msk [vmem:[%s172 + $0x24] sm:$0xf] %vm2251, %v2204
      %2262 = vst.msk [vmem:[%s172 + $0x28] sm:$0xf] %vm2251, %v2205
      %2263 = vst.msk [vmem:[%s172 + $0x2c] sm:$0xf] %vm2251, %v2206
      %2264 = vst.msk [vmem:[%s172 + $0x30] sm:$0xf] %vm2251, %v2207
      %2265 = vst.msk [vmem:[%s172 + $0x34] sm:$0xf] %vm2251, %v2208
      %2266 = vst.msk [vmem:[%s172 + $0x38] sm:$0xf] %vm2251, %v2209
      %2267 = vst.msk [vmem:[%s172 + $0x3c] sm:$0xf] %vm2251, %v2210
      %2268 = vst.msk [vmem:[%s172 + $0x40] sm:$0xf] %vm2251, %v2211
      %2269 = vst.msk [vmem:[%s172 + $0x44] sm:$0xf] %vm2251, %v2212
      %2270 = vst.msk [vmem:[%s172 + $0x48] sm:$0xf] %vm2251, %v2213
      %2271 = vst.msk [vmem:[%s172 + $0x4c] sm:$0xf] %vm2251, %v2214
      %2272 = vst.msk [vmem:[%s172 + $0x50] sm:$0xf] %vm2251, %v2215
      %2273 = vst.msk [vmem:[%s172 + $0x54] sm:$0xf] %vm2251, %v2216
      %2274 = vst.msk [vmem:[%s172 + $0x58] sm:$0xf] %vm2251, %v2217
      %2275 = vst.msk [vmem:[%s172 + $0x5c] sm:$0xf] %vm2251, %v2218
      %2276 = vst.msk [vmem:[%s172 + $0x60] sm:$0xf] %vm2251, %v2219
      %2277 = vst.msk [vmem:[%s172 + $0x64] sm:$0xf] %vm2251, %v2220
      %2278 = vst.msk [vmem:[%s172 + $0x68] sm:$0xf] %vm2251, %v2221
      %2279 = vst.msk [vmem:[%s172 + $0x6c] sm:$0xf] %vm2251, %v2222
      %2280 = vst.msk [vmem:[%s172 + $0x70] sm:$0xf] %vm2251, %v2223
      %2281 = vst.msk [vmem:[%s172 + $0x74] sm:$0xf] %vm2251, %v2224
      %2282 = vst.msk [vmem:[%s172 + $0x78] sm:$0xf] %vm2251, %v2225
      %2283 = vst.msk [vmem:[%s172 + $0x7c] sm:$0xf] %vm2251, %v2226
      %2284 = vst.msk [vmem:[%s172 + $0x80] sm:$0xf] %vm2251, %v2227
      %2285 = vst.msk [vmem:[%s172 + $0x84] sm:$0xf] %vm2251, %v2228
      %2286 = vst.msk [vmem:[%s172 + $0x88] sm:$0xf] %vm2251, %v2229
      %2287 = vst.msk [vmem:[%s172 + $0x8c] sm:$0xf] %vm2251, %v2230
      %2288 = vst.msk [vmem:[%s172 + $0x90] sm:$0xf] %vm2251, %v2231
      %2289 = vst.msk [vmem:[%s172 + $0x94] sm:$0xf] %vm2251, %v2232
      %2290 = vst.msk [vmem:[%s172 + $0x98] sm:$0xf] %vm2251, %v2233
      %2291 = vst.msk [vmem:[%s172 + $0x9c] sm:$0xf] %vm2251, %v2234
      %2292 = vst.msk [vmem:[%s172 + $0xa0] sm:$0xf] %vm2251, %v2235
      %2293 = vst.msk [vmem:[%s172 + $0xa4] sm:$0xf] %vm2251, %v2236
      %2294 = vst.msk [vmem:[%s172 + $0xa8] sm:$0xf] %vm2251, %v2237
      %2295 = vst.msk [vmem:[%s172 + $0xac] sm:$0xf] %vm2251, %v2238
      %2296 = vst.msk [vmem:[%s172 + $0xb0] sm:$0xf] %vm2251, %v2239
      %2297 = vst.msk [vmem:[%s172 + $0xb4] sm:$0xf] %vm2251, %v2240
      %2298 = vst.msk [vmem:[%s172 + $0xb8] sm:$0xf] %vm2251, %v2241
      %2299 = vst.msk [vmem:[%s172 + $0xbc] sm:$0xf] %vm2251, %v2242
      %2300 = vst.msk [vmem:[%s172 + $0xc0] sm:$0xf] %vm2251, %v2243
      %2301 = vst.msk [vmem:[%s172 + $0xc4] sm:$0xf] %vm2251, %v2244
      %2302 = vst.msk [vmem:[%s172 + $0xc8] sm:$0xf] %vm2251, %v2245
      %2303 = vst.msk [vmem:[%s172 + $0xcc] sm:$0xf] %vm2251, %v2246
      %2304 = vst.msk [vmem:[%s172 + $0xd0] sm:$0xf] %vm2251, %v2247
      %2305 = vst.msk [vmem:[%s172 + $0xd4] sm:$0xf] %vm2251, %v2248
      %2306 = vst.msk [vmem:[%s172 + $0xd8] sm:$0xf] %vm2251, %v2249
      %2307 = vst.msk [vmem:[%s172 + $0xdc] sm:$0xf] %vm2251, %v2250
      %s2308 = smul.u32 56, %s14
      %p2309 = scmp.lt.s32.totalorder %s2308, 111
      %s2310 = scalar_select %p2309, %s2308, 111
      %s2311 = smul.addr %s2310, 4
      %s2312 = scalar_lea.vmem %s3, %s2311
      // Predicated region
      $region33: #{conv_block_forward.2} parent=31 // pred_check
        %p2313 = pneg %p100
      $region34: #{conv_block_forward.2} parent=31 // pred_check_branch
        %2315 = sbr.rel (%p2313) target = $region36
      $region35: #{conv_block_forward.2} parent=31 // pred_region
        %s2316 = smul.u32 56, %s14
      $region36: #{conv_block_forward.2} parent=31 // pred_fallthru
        _
    $region32: #{conv_block_forward.2} parent=5 // pred_fallthru
      _
    %p2317 = scmp.le.s32.totalorder 2, %s9
    // Predicated region
    $region37: #{conv_block_forward.2} parent=5 // pred_check
      %p2318 = pneg %p2317
    $region38: #{conv_block_forward.2} parent=5 // pred_check_branch
      %2320 = sbr.rel (%p2318) target = $region40
    $region39: #{conv_block_forward.2} parent=5 // pred_region
      %s2321 = ssub.s32 %s9, 2
      // Predicated region
      $region41: #{conv_block_forward.2} parent=39 // pred_check
        %p2322 = pneg %p106
      $region42: #{conv_block_forward.2} parent=39 // pred_check_branch
        %2324 = sbr.rel (%p2322) target = $region44
      $region43: #{conv_block_forward.2} parent=39 // pred_region
        %s2325 = smul.u32 56, %s15
        %p2326 = scmp.lt.s32.totalorder %s2325, 111
        %s2327 = scalar_select %p2326, %s2325, 111
        %s2328 = smul.addr %s2327, 4
        %s2329 = scalar_lea.vmem %s3, %s2328
      $region44: #{conv_block_forward.2} parent=39 // pred_fallthru
        _
    $region40: #{conv_block_forward.2} parent=5 // pred_fallthru
      _
  $region6: #{conv_block_forward.2} parent=0 // loop_footer
    %s13 = sadd.s32 1, %s9
  $region7: #{conv_block_forward.2} parent=0 // loop_footer_branch
    %8 = sbr.rel target = $region3
  $region8: #{conv_block_forward.2} parent=0 // loop_exit
    _

// kernel: conv_block_forward.3
$region0: #{conv_block_forward.3}
  #allocation0 [shape = 'u32[]', space=smem, size = 0x4, offset = 0x4, fixed_abs, tag = 'smem constant byte address 0x4 - core index']
  #allocation1 [shape = 'u32[72,128]{1,0:T(1,128)}', space=vmem, size = 0x9000, scoped, tag = 'internal scratch']
  %s0 = inlined_call_operand.vmem [shape: bf16[512,150], index: 0, kind: input, shape index: {}]
  %s1 = inlined_call_operand.vmem [shape: bf16[150,16], index: 1, kind: input, shape index: {}]
  %s2 = inlined_call_operand.vmem [shape: f32[1,16], index: 2, kind: input, shape index: {}]
  %s3 = inlined_call_operand.vmem [shape: f32[128,16], index: 3, kind: output, shape index: {}]
  %s4 = sld [smem:[#allocation0]]
  $region45: #{conv_block_forward.3} parent=0
    _
  %s6 = ssub.s32 1, %s4
  %s7 = scalar_select 0, %s6, %s4
  loop: start=0, step=1, limit=4
  $region2: #{conv_block_forward.3} parent=0 // loop_pre_header
    _
  $region3: #{conv_block_forward.3} parent=0 // loop_header
    %s9 = sphi 0, %s13
    %p10 = scmp.ge.s32.totalorder %s9, 4
    %s19 = sphi 0, %s21
    %s22 = sphi 0, %s19
    %s23 = sphi 0, %s22
    %s39 = sphi 0, %s23
    %s43 = sphi 0, %s43
    %s45 = sphi 0, %s43
    %s46 = sphi 0, %s45
    %s60 = sphi 0, %s46
    %s64 = sphi 0, %s64
    %s66 = sphi 0, %s64
    %s67 = sphi 0, %s66
    %s81 = sphi 0, %s67
    %s87 = sphi 0, %s89
    %s90 = sphi 0, %s87
    %s91 = sphi 0, %s90
    %s107 = sphi 0, %s91
  $region4: #{conv_block_forward.3} parent=0 // loop_header_branch
    %12 = sbr.rel (%p10) target = $region8
  $region5: #{conv_block_forward.3} parent=0 // loop_body
    %s14 = ssub.s32 %s9, 1
    %s15 = ssub.s32 %s9, 2
    %s16 = sadd.s32 %s9, 1
    %s17 = ssub.s32 %s9, %s16
    %p18 = scmp.eq.s32.totalorder %s17, 0
    %s20 = sadd.s32 %s19, 1
    %s21 = scalar_select %p18, %s19, %s20
    %p24 = pneg %p18
    %p25 = scmp.eq.s32.totalorder %s9, 1
    %p26 = por %p24, %p25
    %p27 = scmp.ne.s32.totalorder %s19, %s22
    %p28 = scmp.eq.s32.totalorder %s9, 0
    %p29 = por %p27, %p28
    %p30 = scmp.ne.s32.totalorder %s19, %s22
    %p31 = scmp.eq.s32.totalorder %s14, 1
    %p32 = por %p30, %p31
    %p33 = scmp.ne.s32.totalorder %s22, %s23
    %p34 = scmp.eq.s32.totalorder %s14, 0
    %p35 = por %p33, %p34
    %p36 = scmp.ne.s32.totalorder %s22, %s23
    %p37 = scmp.eq.s32.totalorder %s15, 1
    %p38 = por %p36, %p37
    %p40 = scmp.ne.s32.totalorder %s23, %s39
    %p41 = scmp.eq.s32.totalorder %s15, 0
    %p42 = por %p40, %p41
    %s44 = sadd.s32 %s43, 1
    %p47 = scmp.eq.s32.totalorder %s9, 1
    %p48 = scmp.ne.s32.totalorder %s43, %s45
    %p49 = scmp.eq.s32.totalorder %s9, 0
    %p50 = por %p48, %p49
    %p51 = scmp.ne.s32.totalorder %s43, %s45
    %p52 = scmp.eq.s32.totalorder %s14, 1
    %p53 = por %p51, %p52
    %p54 = scmp.ne.s32.totalorder %s45, %s46
    %p55 = scmp.eq.s32.totalorder %s14, 0
    %p56 = por %p54, %p55
    %p57 = scmp.ne.s32.totalorder %s45, %s46
    %p58 = scmp.eq.s32.totalorder %s15, 1
    %p59 = por %p57, %p58
    %p61 = scmp.ne.s32.totalorder %s46, %s60
    %p62 = scmp.eq.s32.totalorder %s15, 0
    %p63 = por %p61, %p62
    %s65 = sadd.s32 %s64, 1
    %p68 = scmp.eq.s32.totalorder %s9, 1
    %p69 = scmp.ne.s32.totalorder %s64, %s66
    %p70 = scmp.eq.s32.totalorder %s9, 0
    %p71 = por %p69, %p70
    %p72 = scmp.ne.s32.totalorder %s64, %s66
    %p73 = scmp.eq.s32.totalorder %s14, 1
    %p74 = por %p72, %p73
    %p75 = scmp.ne.s32.totalorder %s66, %s67
    %p76 = scmp.eq.s32.totalorder %s14, 0
    %p77 = por %p75, %p76
    %p78 = scmp.ne.s32.totalorder %s66, %s67
    %p79 = scmp.eq.s32.totalorder %s15, 1
    %p80 = por %p78, %p79
    %p82 = scmp.ne.s32.totalorder %s67, %s81
    %p83 = scmp.eq.s32.totalorder %s15, 0
    %p84 = por %p82, %p83
    %s85 = ssub.s32 %s9, %s16
    %p86 = scmp.eq.s32.totalorder %s85, 0
    %s88 = sadd.s32 %s87, 1
    %s89 = scalar_select %p86, %s87, %s88
    %p92 = pneg %p86
    %p93 = scmp.eq.s32.totalorder %s9, 1
    %p94 = por %p92, %p93
    %p95 = scmp.ne.s32.totalorder %s87, %s90
    %p96 = scmp.eq.s32.totalorder %s9, 0
    %p97 = por %p95, %p96
    %p98 = scmp.ne.s32.totalorder %s87, %s90
    %p99 = scmp.eq.s32.totalorder %s14, 1
    %p100 = por %p98, %p99
    %p101 = scmp.ne.s32.totalorder %s90, %s91
    %p102 = scmp.eq.s32.totalorder %s14, 0
    %p103 = por %p101, %p102
    %p104 = scmp.ne.s32.totalorder %s90, %s91
    %p105 = scmp.eq.s32.totalorder %s15, 1
    %p106 = por %p104, %p105
    %p108 = scmp.ne.s32.totalorder %s91, %s107
    %p109 = scmp.eq.s32.totalorder %s15, 0
    %p110 = por %p108, %p109
    %p111 = scmp.le.s32.totalorder 1, %s9
    %p112 = scmp.lt.s32.totalorder %s9, 3
    %p113 = pnand %p111, %p112
    %p114 = pneg %p113
    // Predicated region
    $region9: #{conv_block_forward.3} parent=5 // pred_check
      _
    $region10: #{conv_block_forward.3} parent=5 // pred_check_branch
      %116 = sbr.rel (%p113) target = $region12
    $region11: #{conv_block_forward.3} parent=5 // pred_region
      %s117 = ssub.s32 %s9, 1
      // Predicated region
      $region13: #{conv_block_forward.3} parent=11 // pred_check
        %p118 = pneg %p56
      $region14: #{conv_block_forward.3} parent=11 // pred_check_branch
        %120 = sbr.rel (%p118) target = $region16
      $region15: #{conv_block_forward.3} parent=11 // pred_region
        _
      $region16: #{conv_block_forward.3} parent=11 // pred_fallthru
        _
      // Predicated region
      $region17: #{conv_block_forward.3} parent=11 // pred_check
        %p121 = pneg %p77
      $region18: #{conv_block_forward.3} parent=11 // pred_check_branch
        %123 = sbr.rel (%p121) target = $region20
      $region19: #{conv_block_forward.3} parent=11 // pred_region
        _
      $region20: #{conv_block_forward.3} parent=11 // pred_fallthru
        _
    $region12: #{conv_block_forward.3} parent=5 // pred_fallthru
      _
    %p124 = scmp.lt.s32.totalorder %s9, 2
    // Predicated region
    $region21: #{conv_block_forward.3} parent=5 // pred_check
      %p125 = pneg %p124
    $region22: #{conv_block_forward.3} parent=5 // pred_check_branch
      %127 = sbr.rel (%p125) target = $region24
    $region23: #{conv_block_forward.3} parent=5 // pred_region
      // Predicated region
      $region25: #{conv_block_forward.3} parent=23 // pred_check
        %p128 = pneg %p29
      $region26: #{conv_block_forward.3} parent=23 // pred_check_branch
        %130 = sbr.rel (%p128) target = $region28
      $region27: #{conv_block_forward.3} parent=23 // pred_region
        %s131 = smul.u32 32, %s9
        %p132 = scmp.lt.s32.totalorder %s131, 63
        %s133 = scalar_select %p132, %s131, 63
        %s134 = smul.addr %s133, 2
        %s135 = smul.addr %s134, 4
        %s136 = scalar_lea.vmem %s0, %s135
        %s137 = smul.u32 32, %s9
      $region28: #{conv_block_forward.3} parent=23 // pred_fallthru
        _
    $region24: #{conv_block_forward.3} parent=5 // pred_fallthru
      _
    %p138 = scmp.le.s32.totalorder 1, %s9
    %p139 = scmp.lt.s32.totalorder %s9, 3
    %p140 = pnand %p138, %p139
    %p141 = pneg %p140
    // Predicated region
    $region29: #{conv_block_forward.3} parent=5 // pred_check
      _
    $region30: #{conv_block_forward.3} parent=5 // pred_check_branch
      %143 = sbr.rel (%p140) target = $region32
    $region31: #{conv_block_forward.3} parent=5 // pred_region
      %s144 = ssub.s32 %s9, 1
      %s145 = smul.u32 32, %s14
      %p146 = scmp.lt.s32.totalorder %s145, 63
      %s147 = scalar_select %p146, %s145, 63
      %s148 = smul.addr %s147, 2
      %s149 = smul.addr %s148, 4
      %s150 = scalar_lea.vmem %s0, %s149
      %p151 = pneg %p35
      %p152 = pneg %p32
      %p153 = pneg %p56
      %p154 = pneg %p53
      %p155 = pneg %p77
      %p156 = pneg %p74
      %p157 = pneg %p103
      %p158 = pneg %p100
      %s159 = smul.u32 8, %s14
      %p160 = scmp.lt.s32.totalorder %s159, 15
      %s161 = scalar_select %p160, %s159, 15
      %s162 = smul.addr %s161, 8
      %s163 = scalar_lea.vmem %s3, %s162
      %s164 = smul.u32 32, %s14
      %p165 = scmp.lt.s32.totalorder %s164, 63
      %s166 = scalar_select %p165, %s164, 63
      %s167 = smul.addr %s166, 2
      %s168 = smul.addr %s167, 4
      %s169 = scalar_lea.vmem %s0, %s168
      %s170 = smul.u32 32, %s14
      %s171 = smul.u32 8, %s14
      %p172 = scmp.lt.s32.totalorder %s171, 15
      %s173 = scalar_select %p172, %s171, 15
      %s174 = smul.addr %s173, 8
      %s175 = scalar_lea.vmem %s3, %s174
      %s176 = smul.u32 8, %s14
      %v178 = vld [vmem:[%s169] sm:$0xff]
      %v179 = vld [vmem:[%s169 + $0x8] sm:$0xff]
      %v180 = vld [vmem:[%s169 + $0x10] sm:$0xff]
      %v181 = vld [vmem:[%s169 + $0x18] sm:$0xff]
      %v182 = vld [vmem:[%s169 + $0x20] sm:$0xff]
      %v183 = vld [vmem:[%s169 + $0x28] sm:$0xff]
      %v184 = vld [vmem:[%s169 + $0x30] sm:$0xff]
      %v185 = vld [vmem:[%s169 + $0x38] sm:$0xff]
      %v186 = vld [vmem:[%s169 + $0x40] sm:$0xff]
      %v187 = vld [vmem:[%s169 + $0x48] sm:$0xff]
      %v188 = vld [vmem:[%s169 + $0x50] sm:$0xff]
      %v189 = vld [vmem:[%s169 + $0x58] sm:$0xff]
      %v190 = vld [vmem:[%s169 + $0x60] sm:$0xff]
      %v191 = vld [vmem:[%s169 + $0x68] sm:$0xff]
      %v192 = vld [vmem:[%s169 + $0x70] sm:$0xff]
      %v193 = vld [vmem:[%s169 + $0x78] sm:$0xff]
      %v194 = vld [vmem:[%s169 + $0x80] sm:$0xff]
      %v195 = vld [vmem:[%s169 + $0x88] sm:$0xff]
      %v196 = vld [vmem:[%s169 + $0x90] sm:$0xff]
      %v197 = vld [vmem:[%s169 + $0x98] sm:$0xff]
      %v198 = vld [vmem:[%s169 + $0xa0] sm:$0xff]
      %v199 = vld [vmem:[%s169 + $0xa8] sm:$0xff]
      %v200 = vld [vmem:[%s169 + $0xb0] sm:$0xff]
      %v201 = vld [vmem:[%s169 + $0xb8] sm:$0xff]
      %v202 = vld [vmem:[%s169 + $0xc0] sm:$0xff]
      %v203 = vld [vmem:[%s169 + $0xc8] sm:$0xff]
      %v204 = vld [vmem:[%s169 + $0xd0] sm:$0xff]
      %v205 = vld [vmem:[%s169 + $0xd8] sm:$0xff]
      %v206 = vld [vmem:[%s169 + $0xe0] sm:$0xff]
      %v207 = vld [vmem:[%s169 + $0xe8] sm:$0xff]
      %v208 = vld [vmem:[%s169 + $0xf0] sm:$0xff]
      %v209 = vld [vmem:[%s169 + $0xf8] sm:$0xff]
      %v210 = vld [vmem:[%s1] sm:$0xf]
      %v211 = vld [vmem:[%s1 + $0x4] sm:$0xf]
      %v212 = vld [vmem:[%s1 + $0x8] sm:$0xf]
      %v213 = vld [vmem:[%s1 + $0xc] sm:$0xf]
      %v214 = vld [vmem:[%s1 + $0x10] sm:$0xf]
      %v215 = vld [vmem:[%s1 + $0x14] sm:$0xf]
      %v216 = vld [vmem:[%s1 + $0x18] sm:$0xf]
      %v217 = vld [vmem:[%s1 + $0x1c] sm:$0xf]
      %v218 = vld [vmem:[%s1 + $0x20] sm:$0xf]
      %v219 = vld [vmem:[%s1 + $0x24] sm:$0xf]
      %v220 = vld [vmem:[%s1 + $0x28] sm:$0xf]
      %v221 = vld [vmem:[%s1 + $0x2c] sm:$0xf]
      %v222 = vld [vmem:[%s1 + $0x30] sm:$0xf]
      %v223 = vld [vmem:[%s1 + $0x34] sm:$0xf]
      %v224 = vld [vmem:[%s1 + $0x38] sm:$0xf]
      %v225 = vld [vmem:[%s1 + $0x3c] sm:$0xf]
      %v226 = vld [vmem:[%s1 + $0x40] sm:$0xf]
      %v227 = vld [vmem:[%s1 + $0x44] sm:$0xf]
      %v228 = vld [vmem:[%s1 + $0x48] sm:$0x7]
      %v261 = vunpack.c.l.b16 %v178
      %v262 = vunpack.c.h.b16 %v178
      %v263 = vunpack.c.l.b16 %v179
      %v264 = vunpack.c.h.b16 %v179
      %v265 = vunpack.c.l.b16 %v180
      %v266 = vunpack.c.h.b16 %v180
      %v267 = vunpack.c.l.b16 %v181
      %v268 = vunpack.c.h.b16 %v181
      %v269 = vunpack.c.l.b16 %v182
      %v270 = vunpack.c.h.b16 %v182
      %v271 = vunpack.c.l.b16 %v183
      %v272 = vunpack.c.h.b16 %v183
      %v273 = vunpack.c.l.b16 %v184
      %v274 = vunpack.c.h.b16 %v184
      %v275 = vunpack.c.l.b16 %v185
      %v276 = vunpack.c.h.b16 %v185
      %v277 = vunpack.c.l.b16 %v186
      %v278 = vunpack.c.h.b16 %v186
      %v279 = vunpack.c.l.b16 %v187
      %v280 = vunpack.c.h.b16 %v187
      %v281 = vunpack.c.l.b16 %v188
      %v282 = vunpack.c.h.b16 %v188
      %v283 = vunpack.c.l.b16 %v189
      %v284 = vunpack.c.h.b16 %v189
      %v285 = vunpack.c.l.b16 %v190
      %v286 = vunpack.c.h.b16 %v190
      %v287 = vunpack.c.l.b16 %v191
      %v288 = vunpack.c.h.b16 %v191
      %v289 = vunpack.c.l.b16 %v192
      %v290 = vunpack.c.h.b16 %v192
      %v291 = vunpack.c.l.b16 %v193
      %v292 = vunpack.c.h.b16 %v193
      %v293 = vunpack.c.l.b16 %v194
      %v294 = vunpack.c.h.b16 %v194
      %v295 = vunpack.c.l.b16 %v195
      %v296 = vunpack.c.h.b16 %v195
      %v297 = vunpack.c.l.b16 %v196
      %v298 = vunpack.c.h.b16 %v196
      %v299 = vunpack.c.l.b16 %v197
      %v300 = vunpack.c.h.b16 %v197
      %v301 = vunpack.c.l.b16 %v198
      %v302 = vunpack.c.h.b16 %v198
      %v303 = vunpack.c.l.b16 %v199
      %v304 = vunpack.c.h.b16 %v199
      %v305 = vunpack.c.l.b16 %v200
      %v306 = vunpack.c.h.b16 %v200
      %v307 = vunpack.c.l.b16 %v201
      %v308 = vunpack.c.h.b16 %v201
      %v309 = vunpack.c.l.b16 %v202
      %v310 = vunpack.c.h.b16 %v202
      %v311 = vunpack.c.l.b16 %v203
      %v312 = vunpack.c.h.b16 %v203
      %v313 = vunpack.c.l.b16 %v204
      %v314 = vunpack.c.h.b16 %v204
      %v315 = vunpack.c.l.b16 %v205
      %v316 = vunpack.c.h.b16 %v205
      %v317 = vunpack.c.l.b16 %v206
      %v318 = vunpack.c.h.b16 %v206
      %v319 = vunpack.c.l.b16 %v207
      %v320 = vunpack.c.h.b16 %v207
      %v321 = vunpack.c.l.b16 %v208
      %v322 = vunpack.c.h.b16 %v208
      %v323 = vunpack.c.l.b16 %v209
      %v324 = vunpack.c.h.b16 %v209
      %v325 = vpack.c.b16 %v263, %v261
      %v326 = vpack.c.b16 %v264, %v262
      %v327 = vpack.c.b16 %v267, %v265
      %v328 = vpack.c.b16 %v268, %v266
      %v329 = vpack.c.b16 %v271, %v269
      %v330 = vpack.c.b16 %v272, %v270
      %v331 = vpack.c.b16 %v275, %v273
      %v332 = vpack.c.b16 %v276, %v274
      %v333 = vpack.c.b16 %v279, %v277
      %v334 = vpack.c.b16 %v280, %v278
      %v335 = vpack.c.b16 %v283, %v281
      %v336 = vpack.c.b16 %v284, %v282
      %v337 = vpack.c.b16 %v287, %v285
      %v338 = vpack.c.b16 %v288, %v286
      %v339 = vpack.c.b16 %v291, %v289
      %v340 = vpack.c.b16 %v292, %v290
      %v341 = vpack.c.b16 %v295, %v293
      %v342 = vpack.c.b16 %v296, %v294
      %v343 = vpack.c.b16 %v299, %v297
      %v344 = vpack.c.b16 %v300, %v298
      %v345 = vpack.c.b16 %v303, %v301
      %v346 = vpack.c.b16 %v304, %v302
      %v347 = vpack.c.b16 %v307, %v305
      %v348 = vpack.c.b16 %v308, %v306
      %v349 = vpack.c.b16 %v311, %v309
      %v350 = vpack.c.b16 %v312, %v310
      %v351 = vpack.c.b16 %v315, %v313
      %v352 = vpack.c.b16 %v316, %v314
      %v353 = vpack.c.b16 %v319, %v317
      %v354 = vpack.c.b16 %v320, %v318
      %v355 = vpack.c.b16 %v323, %v321
      %v356 = vpack.c.b16 %v324, %v322
      %v392 = vunpack.c.l.b16 %v210
      %v393 = vunpack.c.l.b16 %v211
      %v394 = vunpack.c.l.b16 %v212
      %v395 = vunpack.c.l.b16 %v213
      %v396 = vunpack.c.l.b16 %v214
      %v397 = vunpack.c.l.b16 %v215
      %v398 = vunpack.c.l.b16 %v216
      %v399 = vunpack.c.l.b16 %v217
      %v400 = vunpack.c.l.b16 %v218
      %v401 = vunpack.c.l.b16 %v219
      %v402 = vunpack.c.l.b16 %v220
      %v403 = vunpack.c.l.b16 %v221
      %v404 = vunpack.c.l.b16 %v222
      %v405 = vunpack.c.l.b16 %v223
      %v406 = vunpack.c.l.b16 %v224
      %v407 = vunpack.c.l.b16 %v225
      %v408 = vunpack.c.l.b16 %v226
      %v409 = vunpack.c.l.b16 %v227
      %v410 = vunpack.c.l.b16 %v228
      %v411 = vpack.c.b16 %v393, %v392
      %v412 = vpack.c.b16 %v395, %v394
      %v413 = vpack.c.b16 %v397, %v396
      %v414 = vpack.c.b16 %v399, %v398
      %v415 = vpack.c.b16 %v401, %v400
      %v416 = vpack.c.b16 %v403, %v402
      %v417 = vpack.c.b16 %v405, %v404
      %v418 = vpack.c.b16 %v407, %v406
      %v419 = vpack.c.b16 %v409, %v408
      %v420 = vpack.c.b16 %v410, %v410
      %vm430 = vcmask 179200
      %v432 = vsel %vm430, %v326, 0
      %v435 = vsel %vm430, %v328, 0
      %v438 = vsel %vm430, %v330, 0
      %v441 = vsel %vm430, %v332, 0
      %v444 = vsel %vm430, %v334, 0
      %v447 = vsel %vm430, %v336, 0
      %v450 = vsel %vm430, %v338, 0
      %v453 = vsel %vm430, %v340, 0
      %v456 = vsel %vm430, %v342, 0
      %v459 = vsel %vm430, %v344, 0
      %v462 = vsel %vm430, %v346, 0
      %v465 = vsel %vm430, %v348, 0
      %v468 = vsel %vm430, %v350, 0
      %v471 = vsel %vm430, %v352, 0
      %v474 = vsel %vm430, %v354, 0
      %v477 = vsel %vm430, %v356, 0
      %vm479 = vcmask 1042432
      %v481 = vsel %vm479, %v420, 0
      %483 = vmatpush.bf16.msra.mxu0 %v418
      %484 = vmatpush.bf16.msra.mxu0 %v417
      %485 = vmatpush.bf16.msra.mxu0 %v416
      %486 = vmatpush.bf16.msra.mxu0 %v415
      %487 = vmatpush.bf16.msra.mxu0 %v414
      %488 = vmatpush.bf16.msra.mxu0 %v413
      %489 = vmatpush.bf16.msra.mxu0 %v412
      %490 = vmatpush.bf16.msra.mxu0 %v411
      %491 = vmatmul.bf16.gmra.mxu0 %v325
      %v492 = vpop.f32.mrf.mxu0
      %v493 = vadd.f32 0.0, %v492
      %v494 = vpop.f32.mrf.mxu0
      %v495 = vadd.f32 0.0, %v494
      %496 = vmatmul.bf16.gmra.mxu0 %v327
      %v497 = vpop.f32.mrf.mxu0
      %v498 = vadd.f32 0.0, %v497
      %v499 = vpop.f32.mrf.mxu0
      %v500 = vadd.f32 0.0, %v499
      %501 = vmatmul.bf16.gmra.mxu0 %v329
      %v502 = vpop.f32.mrf.mxu0
      %v503 = vadd.f32 0.0, %v502
      %v504 = vpop.f32.mrf.mxu0
      %v505 = vadd.f32 0.0, %v504
      %506 = vmatmul.bf16.gmra.mxu0 %v331
      %v507 = vpop.f32.mrf.mxu0
      %v508 = vadd.f32 0.0, %v507
      %v509 = vpop.f32.mrf.mxu0
      %v510 = vadd.f32 0.0, %v509
      %511 = vmatmul.bf16.gmra.mxu0 %v333
      %v512 = vpop.f32.mrf.mxu0
      %v513 = vadd.f32 0.0, %v512
      %v514 = vpop.f32.mrf.mxu0
      %v515 = vadd.f32 0.0, %v514
      %516 = vmatmul.bf16.gmra.mxu0 %v335
      %v517 = vpop.f32.mrf.mxu0
      %v518 = vadd.f32 0.0, %v517
      %v519 = vpop.f32.mrf.mxu0
      %v520 = vadd.f32 0.0, %v519
      %521 = vmatmul.bf16.gmra.mxu0 %v337
      %v522 = vpop.f32.mrf.mxu0
      %v523 = vadd.f32 0.0, %v522
      %v524 = vpop.f32.mrf.mxu0
      %v525 = vadd.f32 0.0, %v524
      %526 = vmatmul.bf16.gmra.mxu0 %v339
      %v527 = vpop.f32.mrf.mxu0
      %v528 = vadd.f32 0.0, %v527
      %v529 = vpop.f32.mrf.mxu0
      %v530 = vadd.f32 0.0, %v529
      %531 = vmatmul.bf16.gmra.mxu0 %v341
      %v532 = vpop.f32.mrf.mxu0
      %v533 = vadd.f32 0.0, %v532
      %v534 = vpop.f32.mrf.mxu0
      %v535 = vadd.f32 0.0, %v534
      %536 = vmatmul.bf16.gmra.mxu0 %v343
      %v537 = vpop.f32.mrf.mxu0
      %v538 = vadd.f32 0.0, %v537
      %v539 = vpop.f32.mrf.mxu0
      %v540 = vadd.f32 0.0, %v539
      %541 = vmatmul.bf16.gmra.mxu0 %v345
      %v542 = vpop.f32.mrf.mxu0
      %v543 = vadd.f32 0.0, %v542
      %v544 = vpop.f32.mrf.mxu0
      %v545 = vadd.f32 0.0, %v544
      %546 = vmatmul.bf16.gmra.mxu0 %v347
      %v547 = vpop.f32.mrf.mxu0
      %v548 = vadd.f32 0.0, %v547
      %v549 = vpop.f32.mrf.mxu0
      %v550 = vadd.f32 0.0, %v549
      %551 = vmatmul.bf16.gmra.mxu0 %v349
      %v552 = vpop.f32.mrf.mxu0
      %v553 = vadd.f32 0.0, %v552
      %v554 = vpop.f32.mrf.mxu0
      %v555 = vadd.f32 0.0, %v554
      %556 = vmatmul.bf16.gmra.mxu0 %v351
      %v557 = vpop.f32.mrf.mxu0
      %v558 = vadd.f32 0.0, %v557
      %v559 = vpop.f32.mrf.mxu0
      %v560 = vadd.f32 0.0, %v559
      %561 = vmatmul.bf16.gmra.mxu0 %v353
      %v562 = vpop.f32.mrf.mxu0
      %v563 = vadd.f32 0.0, %v562
      %v564 = vpop.f32.mrf.mxu0
      %v565 = vadd.f32 0.0, %v564
      %566 = vmatmul.bf16.gmra.mxu0 %v355
      %v567 = vpop.f32.mrf.mxu0
      %v568 = vadd.f32 0.0, %v567
      %v569 = vpop.f32.mrf.mxu0
      %v570 = vadd.f32 0.0, %v569
      %571 = vdwg.mxu0
      %572 = vmatpush.bf16.msra.mxu0 0
      %573 = vmatpush.bf16.msra.mxu0 0
      %574 = vmatpush.bf16.msra.mxu0 0
      %575 = vmatpush.bf16.msra.mxu0 0
      %576 = vmatpush.bf16.msra.mxu0 0
      %577 = vmatpush.bf16.msra.mxu0 0
      %578 = vmatpush.bf16.msra.mxu0 %v481
      %579 = vmatpush.bf16.msra.mxu0 %v419
      %580 = vmatmul.bf16.gmra.mxu0 %v432
      %v581 = vpop.f32.mrf.mxu0
      %v582 = vadd.f32 %v493, %v581
      %v583 = vpop.f32.mrf.mxu0
      %v584 = vadd.f32 %v495, %v583
      %585 = vmatmul.bf16.gmra.mxu0 %v435
      %v586 = vpop.f32.mrf.mxu0
      %v587 = vadd.f32 %v498, %v586
      %v588 = vpop.f32.mrf.mxu0
      %v589 = vadd.f32 %v500, %v588
      %590 = vmatmul.bf16.gmra.mxu0 %v438
      %v591 = vpop.f32.mrf.mxu0
      %v592 = vadd.f32 %v503, %v591
      %v593 = vpop.f32.mrf.mxu0
      %v594 = vadd.f32 %v505, %v593
      %595 = vmatmul.bf16.gmra.mxu0 %v441
      %v596 = vpop.f32.mrf.mxu0
      %v597 = vadd.f32 %v508, %v596
      %v598 = vpop.f32.mrf.mxu0
      %v599 = vadd.f32 %v510, %v598
      %600 = vmatmul.bf16.gmra.mxu0 %v444
      %v601 = vpop.f32.mrf.mxu0
      %v602 = vadd.f32 %v513, %v601
      %v603 = vpop.f32.mrf.mxu0
      %v604 = vadd.f32 %v515, %v603
      %605 = vmatmul.bf16.gmra.mxu0 %v447
      %v606 = vpop.f32.mrf.mxu0
      %v607 = vadd.f32 %v518, %v606
      %v608 = vpop.f32.mrf.mxu0
      %v609 = vadd.f32 %v520, %v608
      %610 = vmatmul.bf16.gmra.mxu0 %v450
      %v611 = vpop.f32.mrf.mxu0
      %v612 = vadd.f32 %v523, %v611
      %v613 = vpop.f32.mrf.mxu0
      %v614 = vadd.f32 %v525, %v613
      %615 = vmatmul.bf16.gmra.mxu0 %v453
      %v616 = vpop.f32.mrf.mxu0
      %v617 = vadd.f32 %v528, %v616
      %v618 = vpop.f32.mrf.mxu0
      %v619 = vadd.f32 %v530, %v618
      %620 = vmatmul.bf16.gmra.mxu0 %v456
      %v621 = vpop.f32.mrf.mxu0
      %v622 = vadd.f32 %v533, %v621
      %v623 = vpop.f32.mrf.mxu0
      %v624 = vadd.f32 %v535, %v623
      %625 = vmatmul.bf16.gmra.mxu0 %v459
      %v626 = vpop.f32.mrf.mxu0
      %v627 = vadd.f32 %v538, %v626
      %v628 = vpop.f32.mrf.mxu0
      %v629 = vadd.f32 %v540, %v628
      %630 = vmatmul.bf16.gmra.mxu0 %v462
      %v631 = vpop.f32.mrf.mxu0
      %v632 = vadd.f32 %v543, %v631
      %v633 = vpop.f32.mrf.mxu0
      %v634 = vadd.f32 %v545, %v633
      %635 = vmatmul.bf16.gmra.mxu0 %v465
      %v636 = vpop.f32.mrf.mxu0
      %v637 = vadd.f32 %v548, %v636
      %v638 = vpop.f32.mrf.mxu0
      %v639 = vadd.f32 %v550, %v638
      %640 = vmatmul.bf16.gmra.mxu0 %v468
      %v641 = vpop.f32.mrf.mxu0
      %v642 = vadd.f32 %v553, %v641
      %v643 = vpop.f32.mrf.mxu0
      %v644 = vadd.f32 %v555, %v643
      %645 = vmatmul.bf16.gmra.mxu0 %v471
      %v646 = vpop.f32.mrf.mxu0
      %v647 = vadd.f32 %v558, %v646
      %v648 = vpop.f32.mrf.mxu0
      %v649 = vadd.f32 %v560, %v648
      %650 = vmatmul.bf16.gmra.mxu0 %v474
      %v651 = vpop.f32.mrf.mxu0
      %v652 = vadd.f32 %v563, %v651
      %v653 = vpop.f32.mrf.mxu0
      %v654 = vadd.f32 %v565, %v653
      %655 = vmatmul.bf16.gmra.mxu0 %v477
      %v656 = vpop.f32.mrf.mxu0
      %v657 = vadd.f32 %v568, %v656
      %v658 = vpop.f32.mrf.mxu0
      %v659 = vadd.f32 %v570, %v658
      %660 = vdwg.mxu0
      %v661 = vmax.f32 %v582, %v602
      %v662 = vmax.f32 %v584, %v604
      %v663 = vmax.f32 %v587, %v607
      %v664 = vmax.f32 %v589, %v609
      %v665 = vmax.f32 %v592, %v612
      %v666 = vmax.f32 %v594, %v614
      %v667 = vmax.f32 %v597, %v617
      %v668 = vmax.f32 %v599, %v619
      %v669 = vmax.f32 %v622, %v642
      %v670 = vmax.f32 %v624, %v644
      %v671 = vmax.f32 %v627, %v647
      %v672 = vmax.f32 %v629, %v649
      %v673 = vmax.f32 %v632, %v652
      %v674 = vmax.f32 %v634, %v654
      %v675 = vmax.f32 %v637, %v657
      %v676 = vmax.f32 %v639, %v659
      %v677 = vmax.f32 %v661, %v669
      %v678 = vmax.f32 %v662, %v670
      %v679 = vmax.f32 %v663, %v671
      %v680 = vmax.f32 %v664, %v672
      %v681 = vmax.f32 %v665, %v673
      %v682 = vmax.f32 %v666, %v674
      %v683 = vmax.f32 %v667, %v675
      %v684 = vmax.f32 %v668, %v676
      %v685 = vld [vmem:[%s2] sm:$0x1]
      %v687 = vperm.slane %v685, 0
      %v689 = vadd.f32 %v677, %v687
      %v690 = vadd.f32 %v678, %v687
      %v691 = vadd.f32 %v679, %v687
      %v692 = vadd.f32 %v680, %v687
      %v693 = vadd.f32 %v681, %v687
      %v694 = vadd.f32 %v682, %v687
      %v695 = vadd.f32 %v683, %v687
      %v696 = vadd.f32 %v684, %v687
      %v697 = vmax.f32 %v689, 0.0
      %v698 = vmax.f32 %v690, 0.0
      %v699 = vmax.f32 %v691, 0.0
      %v700 = vmax.f32 %v692, 0.0
      %v701 = vmax.f32 %v693, 0.0
      %v702 = vmax.f32 %v694, 0.0
      %v703 = vmax.f32 %v695, 0.0
      %v704 = vmax.f32 %v696, 0.0
      %vm705 = vcmask 130048
      %706 = vst.msk [vmem:[%s175] sm:$0xff] %vm705, %v697
      %707 = vst.msk [vmem:[%s175 + $0x8] sm:$0xff] %vm705, %v698
      %708 = vst.msk [vmem:[%s175 + $0x10] sm:$0xff] %vm705, %v699
      %709 = vst.msk [vmem:[%s175 + $0x18] sm:$0xff] %vm705, %v700
      %710 = vst.msk [vmem:[%s175 + $0x20] sm:$0xff] %vm705, %v701
      %711 = vst.msk [vmem:[%s175 + $0x28] sm:$0xff] %vm705, %v702
      %712 = vst.msk [vmem:[%s175 + $0x30] sm:$0xff] %vm705, %v703
      %713 = vst.msk [vmem:[%s175 + $0x38] sm:$0xff] %vm705, %v704
      %s714 = smul.u32 8, %s14
      %p715 = scmp.lt.s32.totalorder %s714, 15
      %s716 = scalar_select %p715, %s714, 15
      %s717 = smul.addr %s716, 8
      %s718 = scalar_lea.vmem %s3, %s717
      // Predicated region
      $region33: #{conv_block_forward.3} parent=31 // pred_check
        %p719 = pneg %p100
      $region34: #{conv_block_forward.3} parent=31 // pred_check_branch
        %721 = sbr.rel (%p719) target = $region36
      $region35: #{conv_block_forward.3} parent=31 // pred_region
        %s722 = smul.u32 8, %s14
      $region36: #{conv_block_forward.3} parent=31 // pred_fallthru
        _
    $region32: #{conv_block_forward.3} parent=5 // pred_fallthru
      _
    %p723 = scmp.le.s32.totalorder 2, %s9
    // Predicated region
    $region37: #{conv_block_forward.3} parent=5 // pred_check
      %p724 = pneg %p723
    $region38: #{conv_block_forward.3} parent=5 // pred_check_branch
      %726 = sbr.rel (%p724) target = $region40
    $region39: #{conv_block_forward.3} parent=5 // pred_region
      %s727 = ssub.s32 %s9, 2
      // Predicated region
      $region41: #{conv_block_forward.3} parent=39 // pred_check
        %p728 = pneg %p106
      $region42: #{conv_block_forward.3} parent=39 // pred_check_branch
        %730 = sbr.rel (%p728) target = $region44
      $region43: #{conv_block_forward.3} parent=39 // pred_region
        %s731 = smul.u32 8, %s15
        %p732 = scmp.lt.s32.totalorder %s731, 15
        %s733 = scalar_select %p732, %s731, 15
        %s734 = smul.addr %s733, 8
        %s735 = scalar_lea.vmem %s3, %s734
      $region44: #{conv_block_forward.3} parent=39 // pred_fallthru
        _
    $region40: #{conv_block_forward.3} parent=5 // pred_fallthru
      _
  $region6: #{conv_block_forward.3} parent=0 // loop_footer
    %s13 = sadd.s32 1, %s9
  $region7: #{conv_block_forward.3} parent=0 // loop_footer_branch
    %8 = sbr.rel target = $region3
  $region8: #{conv_block_forward.3} parent=0 // loop_exit
    _

</llo_original>
